<compile_context>
chip_gen: v7x
topology: tpu7x:2x2x1
jax: 0.10.0
libtpu: 0.0.40
codegen_flags: <defaults>
</compile_context>

<pallas_src>
import jax
import jax.numpy as jnp
import numpy as np
from jax.experimental import pallas as pl
from jax.experimental.pallas import tpu as pltpu


# ----------------------------- Pallas kernel -------------------------------

def _predictor_kernel(x_ref,                              # (BB, T, Cin)
                      w1_ref, b1_ref, g1_ref, be1_ref,    # fused conv1 + LN1
                      w2_ref, b2_ref, g2_ref, be2_ref,    # fused conv2 + LN2
                      wl_ref, bl_ref,                     # linear (row) + bias
                      out_ref):                           # (BB, T)
    eps = 1e-5
    BB, T, Cin = x_ref.shape
    M = BB * T

    # Per-flattened-row time index (rows of different batch elements never mix
    # because the rows that would wrap across a batch boundary are masked to 0,
    # which is exactly the zero-padding of the conv).
    row = jax.lax.broadcasted_iota(jnp.int32, (M, 1), 0)
    t_in_row = row % T
    is_first = t_in_row == 0          # rows where x[t-1] must be zero
    is_last = t_in_row == T - 1       # rows where x[t+1] must be zero

    def shifted_cat(h):
        # h: (M, C) f32  ->  (M, 3C) = [h(t-1) | h(t) | h(t+1)]
        hm1 = jnp.where(is_first, 0.0, pltpu.roll(h, 1, axis=0))
        hp1 = jnp.where(is_last, 0.0, pltpu.roll(h, M - 1, axis=0))
        return jnp.concatenate([hm1, h, hp1], axis=-1)

    def conv_ln_relu(h, w_ref, b_ref, g_ref, be_ref):
        # Fused 3-tap conv as one matmul; K = 3*C.
        hc = shifted_cat(h).astype(w_ref.dtype)
        y = jnp.dot(hc, w_ref[...], preferred_element_type=jnp.float32)
        y = y + b_ref[0]
        # LayerNorm (f32 statistics) + ReLU (dropout = identity in eval mode).
        mu = jnp.mean(y, axis=-1, keepdims=True)
        var = jnp.mean((y - mu) ** 2, axis=-1, keepdims=True)
        y = (y - mu) * jax.lax.rsqrt(var + eps) * g_ref[0] + be_ref[0]
        return jnp.maximum(y, 0.0)

    x = x_ref[...].astype(jnp.float32).reshape(M, Cin)

    h = conv_ln_relu(x, w1_ref, b1_ref, g1_ref, be1_ref)    # (M, F)
    h = conv_ln_relu(h, w2_ref, b2_ref, g2_ref, be2_ref)    # (M, F)

    # Linear(F, 1) as a VPU multiply + lane reduction -> lane-dense (BB, T).
    F = h.shape[-1]
    h3 = h.reshape(BB, T, F)
    o = jnp.sum(h3 * wl_ref[0], axis=-1) + bl_ref[0, 0]      # (BB, T)
    out_ref[...] = jnp.maximum(o, 0.0).astype(out_ref.dtype)  # final ReLU


# ------------------------------ Wrapper ------------------------------------

def predictor_forward(x, params, *, block_batch=8, matmul_dtype=jnp.float32):
    """x: (B, T, encoder_dim) float32. Returns (1, B, T) like eval-mode PyTorch."""
    B, T, Cin = x.shape
    F = params["w1"].shape[-1]

    # Batch blocking: pad B to a multiple of BB (BB multiple of 8 keeps the
    # output block second-minor dim tiling-friendly).
    BB = block_batch
    B_pad = ((B + BB - 1) // BB) * BB
    if B_pad != B:
        x = jnp.pad(x, ((0, B_pad - B), (0, 0), (0, 0)))

    # Pre-stack the 3 conv taps -> one (3*Cin, Cout) matrix per conv layer.
    w1c = params["w1"].reshape(3 * Cin, F).astype(matmul_dtype)
    w2c = params["w2"].reshape(3 * F, F).astype(matmul_dtype)
    wl_row = params["wl"].reshape(1, F)            # linear weight as a lane row

    weight_args = (w1c, params["b1"], params["g1"], params["be1"],
                   w2c, params["b2"], params["g2"], params["be2"],
                   wl_row, params["bl"])

    def full_spec(a):
        nd = a.ndim
        return pl.BlockSpec(a.shape, lambda i, nd=nd: (0,) * nd)

    out = pl.pallas_call(
        _predictor_kernel,
        out_shape=jax.ShapeDtypeStruct((B_pad, T), jnp.float32),
        grid=(B_pad // BB,),
        in_specs=[pl.BlockSpec((BB, T, Cin), lambda i: (i, 0, 0))]
                 + [full_spec(a) for a in weight_args],
        out_specs=pl.BlockSpec((BB, T), lambda i: (i, 0)),
        compiler_params=pltpu.CompilerParams(
            dimension_semantics=("parallel",)),
    )(x, *weight_args)

    out = out[:B]                     # drop batch padding; torch .squeeze()
    return out[None, :, :]            # eval mode: .unsqueeze(0) -> (1, B, T)


# -------------------------- Parameter construction -------------------------

def init_params(key, encoder_dim, filter_size, kernel_size=3):
    # kernel_size must be 3 to match the module's padding=1 "same" behaviour.
    assert kernel_size == 3
    ks = jax.random.split(key, 6)
    s1 = 1.0 / np.sqrt(encoder_dim * kernel_size)
    s2 = 1.0 / np.sqrt(filter_size * kernel_size)
    sl = 1.0 / np.sqrt(filter_size)
    # Conv weights stored as (K, Cin, Cout) so y = sum_k x_shift_k @ W[k].
    w1 = jax.random.uniform(ks[0], (kernel_size, encoder_dim, filter_size),
                            jnp.float32, -s1, s1)
    b1 = jax.random.uniform(ks[1], (1, filter_size), jnp.float32, -s1, s1)
    w2 = jax.random.uniform(ks[2], (kernel_size, filter_size, filter_size),
                            jnp.float32, -s2, s2)
    b2 = jax.random.uniform(ks[3], (1, filter_size), jnp.float32, -s2, s2)
    wl = jax.random.uniform(ks[4], (filter_size, 1), jnp.float32, -sl, sl)
    bl = jax.random.uniform(ks[5], (1, 1), jnp.float32, -sl, sl)
    return dict(
        w1=w1, b1=b1,
        g1=jnp.ones((1, filter_size), jnp.float32),
        be1=jnp.zeros((1, filter_size), jnp.float32),
        w2=w2, b2=b2,
        g2=jnp.ones((1, filter_size), jnp.float32),
        be2=jnp.zeros((1, filter_size), jnp.float32),
        wl=wl, bl=bl,
    )


# ------------------------- Pure-JAX reference ------------------------------

def predictor_reference(x, p):
    eps = 1e-5

    def conv3(x, w, b):                       # x: (B, T, Cin)
        xp = jnp.pad(x, ((0, 0), (1, 1), (0, 0)))
        y = (jnp.einsum("btc,cf->btf", xp[:, :-2], w[0])
             + jnp.einsum("btc,cf->btf", xp[:, 1:-1], w[1])
             + jnp.einsum("btc,cf->btf", xp[:, 2:], w[2]))
        return y + b[0]

    def ln(y, g, b):
        mu = jnp.mean(y, -1, keepdims=True)
        var = jnp.mean((y - mu) ** 2, -1, keepdims=True)
        return (y - mu) / jnp.sqrt(var + eps) * g[0] + b[0]

    h = jnp.maximum(ln(conv3(x, p["w1"], p["b1"]), p["g1"], p["be1"]), 0.0)
    h = jnp.maximum(ln(conv3(h, p["w2"], p["b2"]), p["g2"], p["be2"]), 0.0)
    o = jnp.maximum(jnp.einsum("btf,fo->bto", h, p["wl"]) + p["bl"][0, 0], 0.0)
    return o[..., 0][None, :, :]


# --------------------------------- Main -------------------------------------

if __name__ == "__main__":
    B, T = 12, 16                      # B=12 also exercises the batch-padding path
    encoder_dim, filter_size = 32, 32  # duration_predictor_kernel_size = 3

    key = jax.random.PRNGKey(0)
    kx, kp = jax.random.split(key)
    x = jax.random.normal(kx, (B, T, encoder_dim), jnp.float32)
    params = init_params(kp, encoder_dim, filter_size)

    ref = predictor_reference(x, params)

    # f32 matmul path: exact semantics check.
    out = jax.block_until_ready(predictor_forward(x, params, block_batch=8))
    assert out.shape == (1, B, T), out.shape
    np.testing.assert_allclose(np.asarray(out), np.asarray(ref),
                               rtol=1e-5, atol=1e-5)

    # bf16 matmul-operand path (f32 accumulation + f32 LayerNorm): halves HBM
    # traffic for the streamed input and doubles MXU rate on v6e/v7x.
    out_bf16 = jax.block_until_ready(
        predictor_forward(x, params, block_batch=8, matmul_dtype=jnp.bfloat16))
    np.testing.assert_allclose(np.asarray(out_bf16), np.asarray(ref),
                               rtol=1e-1, atol=1e-1)

    print("KERNEL_OK")
</pallas_src>

<mosaic_0001>
module attributes {stable_mosaic.version = 11 : i64} {
  func.func @_predictor_kernel(%arg0: i32, %arg1: memref<8x16x32xf32, #tpu.memory_space<vmem>>, %arg2: memref<96x32xf32, #tpu.memory_space<vmem>>, %arg3: memref<1x32xf32, #tpu.memory_space<vmem>>, %arg4: memref<1x32xf32, #tpu.memory_space<vmem>>, %arg5: memref<1x32xf32, #tpu.memory_space<vmem>>, %arg6: memref<96x32xf32, #tpu.memory_space<vmem>>, %arg7: memref<1x32xf32, #tpu.memory_space<vmem>>, %arg8: memref<1x32xf32, #tpu.memory_space<vmem>>, %arg9: memref<1x32xf32, #tpu.memory_space<vmem>>, %arg10: memref<1x32xf32, #tpu.memory_space<vmem>>, %arg11: memref<1x1xf32, #tpu.memory_space<vmem>>, %arg12: memref<8x16xf32, #tpu.memory_space<vmem>>) attributes {dimension_semantics = [#tpu.dimension_semantics<parallel>], iteration_bounds = array<i64: 2>, scalar_prefetch = 0 : i64, scratch_operands = 0 : i64, tpu.core_type = #tpu.core_type<tc>, window_params = [{transform_indices = @transform_0, window_bounds = array<i64: 8, 16, 32>}, {pipeline_mode = #tpu.pipeline_mode<synchronous>, transform_indices = @transform_1, window_bounds = array<i64: 96, 32>}, {pipeline_mode = #tpu.pipeline_mode<synchronous>, transform_indices = @transform_2, window_bounds = array<i64: 1, 32>}, {pipeline_mode = #tpu.pipeline_mode<synchronous>, transform_indices = @transform_3, window_bounds = array<i64: 1, 32>}, {pipeline_mode = #tpu.pipeline_mode<synchronous>, transform_indices = @transform_4, window_bounds = array<i64: 1, 32>}, {pipeline_mode = #tpu.pipeline_mode<synchronous>, transform_indices = @transform_5, window_bounds = array<i64: 96, 32>}, {pipeline_mode = #tpu.pipeline_mode<synchronous>, transform_indices = @transform_6, window_bounds = array<i64: 1, 32>}, {pipeline_mode = #tpu.pipeline_mode<synchronous>, transform_indices = @transform_7, window_bounds = array<i64: 1, 32>}, {pipeline_mode = #tpu.pipeline_mode<synchronous>, transform_indices = @transform_8, window_bounds = array<i64: 1, 32>}, {pipeline_mode = #tpu.pipeline_mode<synchronous>, transform_indices = @transform_9, window_bounds = array<i64: 1, 32>}, {pipeline_mode = #tpu.pipeline_mode<synchronous>, transform_indices = @transform_10, window_bounds = array<i64: 1, 1>}, {transform_indices = @transform_11, window_bounds = array<i64: 8, 16>}]} {
    %0 = tpu.iota {dimensions = array<i32: 0>} : vector<128x1xi32>
    %c16_i32 = arith.constant 16 : i32
    %c0_i32 = arith.constant 0 : i32
    %1 = arith.cmpi eq, %c16_i32, %c0_i32 : i32
    %c1_i32 = arith.constant 1 : i32
    %2 = arith.select %1, %c1_i32, %c16_i32 : i32
    %3 = vector.broadcast %2 : i32 to vector<128x1xi32>
    %4 = arith.remsi %0, %3 : vector<128x1xi32>
    %c0_i32_0 = arith.constant 0 : i32
    %5 = vector.broadcast %c0_i32_0 : i32 to vector<128x1xi32>
    %6 = arith.cmpi ne, %4, %5 : vector<128x1xi32>
    %c0_i32_1 = arith.constant 0 : i32
    %7 = vector.broadcast %c0_i32_1 : i32 to vector<128x1xi32>
    %8 = arith.cmpi slt, %4, %7 : vector<128x1xi32>
    %c0_i32_2 = arith.constant 0 : i32
    %9 = arith.cmpi slt, %2, %c0_i32_2 : i32
    %10 = vector.broadcast %9 : i1 to vector<128x1xi1>
    %11 = vector.broadcast %10 : vector<128x1xi1> to vector<128x1xi1>
    %12 = arith.xori %8, %11 : vector<128x1xi1>
    %13 = arith.andi %12, %6 : vector<128x1xi1>
    %14 = vector.broadcast %2 : i32 to vector<128x1xi32>
    %15 = arith.addi %4, %14 : vector<128x1xi32>
    %16 = arith.select %13, %15, %4 : vector<128x1xi1>, vector<128x1xi32>
    %c0_i32_3 = arith.constant 0 : i32
    %17 = vector.broadcast %c0_i32_3 : i32 to vector<128x1xi32>
    %18 = arith.cmpi eq, %16, %17 : vector<128x1xi32>
    %c15_i32 = arith.constant 15 : i32
    %19 = vector.broadcast %c15_i32 : i32 to vector<128x1xi32>
    %20 = arith.cmpi eq, %16, %19 : vector<128x1xi32>
    %c0 = arith.constant 0 : index
    %c0_4 = arith.constant 0 : index
    %c0_5 = arith.constant 0 : index
    %21 = vector.load %arg1[%c0, %c0_4, %c0_5] : memref<8x16x32xf32, #tpu.memory_space<vmem>>, vector<8x16x32xf32>
    %22 = vector.shape_cast %21 : vector<8x16x32xf32> to vector<128x32xf32>
    %c1_i32_6 = arith.constant 1 : i32
    %23 = tpu.dynamic_rotate %22 by %c1_i32_6 dim 0 : vector<128x32xf32>, i32 -> vector<128x32xf32>
    %cst = arith.constant 0.000000e+00 : f32
    %24 = vector.shape_cast %18 : vector<128x1xi1> to vector<128x1xi1>
    %25 = vector.broadcast %24 : vector<128x1xi1> to vector<128x32xi1>
    %26 = vector.broadcast %cst : f32 to vector<128x32xf32>
    %27 = arith.select %25, %26, %23 : vector<128x32xi1>, vector<128x32xf32>
    %c127_i32 = arith.constant 127 : i32
    %28 = tpu.dynamic_rotate %22 by %c127_i32 dim 0 : vector<128x32xf32>, i32 -> vector<128x32xf32>
    %cst_7 = arith.constant 0.000000e+00 : f32
    %29 = vector.shape_cast %20 : vector<128x1xi1> to vector<128x1xi1>
    %30 = vector.broadcast %29 : vector<128x1xi1> to vector<128x32xi1>
    %31 = vector.broadcast %cst_7 : f32 to vector<128x32xf32>
    %32 = arith.select %30, %31, %28 : vector<128x32xi1>, vector<128x32xf32>
    %33 = tpu.concatenate %27, %22, %32 in 1 : vector<128x32xf32>, vector<128x32xf32>, vector<128x32xf32> -> vector<128x96xf32>
    %c0_8 = arith.constant 0 : index
    %c0_9 = arith.constant 0 : index
    %34 = vector.load %arg2[%c0_8, %c0_9] : memref<96x32xf32, #tpu.memory_space<vmem>>, vector<96x32xf32>
    %cst_10 = arith.constant dense<0.000000e+00> : vector<128x32xf32>
    %35 = tpu.matmul %33, %34, %cst_10 {dimension_numbers = #tpu.dot_dimension_numbers<[1], [0], [0], [1], [0, 0, 1, 1], [], []>} : vector<128x96xf32>, vector<96x32xf32>, vector<128x32xf32> -> vector<128x32xf32>
    %c0_11 = arith.constant 0 : index
    %c0_12 = arith.constant 0 : index
    %36 = vector.load %arg3[%c0_11, %c0_12] : memref<1x32xf32, #tpu.memory_space<vmem>>, vector<1x32xf32>
    %37 = vector.shape_cast %36 : vector<1x32xf32> to vector<32xf32>
    %38 = vector.shape_cast %37 : vector<32xf32> to vector<1x32xf32>
    %39 = vector.broadcast %38 : vector<1x32xf32> to vector<128x32xf32>
    %40 = arith.addf %35, %39 : vector<128x32xf32>
    %cst_13 = arith.constant dense<0.000000e+00> : vector<128xf32>
    %41 = vector.multi_reduction <add>, %40, %cst_13 [1] : vector<128x32xf32> to vector<128xf32>
    %42 = vector.shape_cast %41 : vector<128xf32> to vector<128x1xf32>
    %cst_14 = arith.constant 3.200000e+01 : f32
    %43 = vector.broadcast %cst_14 : f32 to vector<128x1xf32>
    %44 = arith.divf %42, %43 : vector<128x1xf32>
    %45 = vector.broadcast %44 : vector<128x1xf32> to vector<128x32xf32>
    %46 = arith.subf %40, %45 : vector<128x32xf32>
    %47 = arith.mulf %46, %46 : vector<128x32xf32>
    %cst_15 = arith.constant dense<0.000000e+00> : vector<128xf32>
    %48 = vector.multi_reduction <add>, %47, %cst_15 [1] : vector<128x32xf32> to vector<128xf32>
    %49 = vector.shape_cast %48 : vector<128xf32> to vector<128x1xf32>
    %cst_16 = arith.constant 3.200000e+01 : f32
    %50 = vector.broadcast %cst_16 : f32 to vector<128x1xf32>
    %51 = arith.divf %49, %50 : vector<128x1xf32>
    %52 = vector.broadcast %44 : vector<128x1xf32> to vector<128x32xf32>
    %53 = arith.subf %40, %52 : vector<128x32xf32>
    %cst_17 = arith.constant 9.99999974E-6 : f32
    %54 = vector.broadcast %cst_17 : f32 to vector<128x1xf32>
    %55 = arith.addf %51, %54 : vector<128x1xf32>
    %56 = math.rsqrt %55 : vector<128x1xf32>
    %57 = vector.broadcast %56 : vector<128x1xf32> to vector<128x32xf32>
    %58 = arith.mulf %53, %57 : vector<128x32xf32>
    %c0_18 = arith.constant 0 : index
    %c0_19 = arith.constant 0 : index
    %59 = vector.load %arg4[%c0_18, %c0_19] : memref<1x32xf32, #tpu.memory_space<vmem>>, vector<1x32xf32>
    %60 = vector.shape_cast %59 : vector<1x32xf32> to vector<32xf32>
    %61 = vector.shape_cast %60 : vector<32xf32> to vector<1x32xf32>
    %62 = vector.broadcast %61 : vector<1x32xf32> to vector<128x32xf32>
    %63 = arith.mulf %58, %62 : vector<128x32xf32>
    %c0_20 = arith.constant 0 : index
    %c0_21 = arith.constant 0 : index
    %64 = vector.load %arg5[%c0_20, %c0_21] : memref<1x32xf32, #tpu.memory_space<vmem>>, vector<1x32xf32>
    %65 = vector.shape_cast %64 : vector<1x32xf32> to vector<32xf32>
    %66 = vector.shape_cast %65 : vector<32xf32> to vector<1x32xf32>
    %67 = vector.broadcast %66 : vector<1x32xf32> to vector<128x32xf32>
    %68 = arith.addf %63, %67 : vector<128x32xf32>
    %cst_22 = arith.constant 0.000000e+00 : f32
    %69 = vector.broadcast %cst_22 : f32 to vector<128x32xf32>
    %70 = arith.maximumf %68, %69 : vector<128x32xf32>
    %c1_i32_23 = arith.constant 1 : i32
    %71 = tpu.dynamic_rotate %70 by %c1_i32_23 dim 0 : vector<128x32xf32>, i32 -> vector<128x32xf32>
    %cst_24 = arith.constant 0.000000e+00 : f32
    %72 = vector.shape_cast %18 : vector<128x1xi1> to vector<128x1xi1>
    %73 = vector.broadcast %72 : vector<128x1xi1> to vector<128x32xi1>
    %74 = vector.broadcast %cst_24 : f32 to vector<128x32xf32>
    %75 = arith.select %73, %74, %71 : vector<128x32xi1>, vector<128x32xf32>
    %c127_i32_25 = arith.constant 127 : i32
    %76 = tpu.dynamic_rotate %70 by %c127_i32_25 dim 0 : vector<128x32xf32>, i32 -> vector<128x32xf32>
    %cst_26 = arith.constant 0.000000e+00 : f32
    %77 = vector.shape_cast %20 : vector<128x1xi1> to vector<128x1xi1>
    %78 = vector.broadcast %77 : vector<128x1xi1> to vector<128x32xi1>
    %79 = vector.broadcast %cst_26 : f32 to vector<128x32xf32>
    %80 = arith.select %78, %79, %76 : vector<128x32xi1>, vector<128x32xf32>
    %81 = tpu.concatenate %75, %70, %80 in 1 : vector<128x32xf32>, vector<128x32xf32>, vector<128x32xf32> -> vector<128x96xf32>
    %c0_27 = arith.constant 0 : index
    %c0_28 = arith.constant 0 : index
    %82 = vector.load %arg6[%c0_27, %c0_28] : memref<96x32xf32, #tpu.memory_space<vmem>>, vector<96x32xf32>
    %cst_29 = arith.constant dense<0.000000e+00> : vector<128x32xf32>
    %83 = tpu.matmul %81, %82, %cst_29 {dimension_numbers = #tpu.dot_dimension_numbers<[1], [0], [0], [1], [0, 0, 1, 1], [], []>} : vector<128x96xf32>, vector<96x32xf32>, vector<128x32xf32> -> vector<128x32xf32>
    %c0_30 = arith.constant 0 : index
    %c0_31 = arith.constant 0 : index
    %84 = vector.load %arg7[%c0_30, %c0_31] : memref<1x32xf32, #tpu.memory_space<vmem>>, vector<1x32xf32>
    %85 = vector.shape_cast %84 : vector<1x32xf32> to vector<32xf32>
    %86 = vector.shape_cast %85 : vector<32xf32> to vector<1x32xf32>
    %87 = vector.broadcast %86 : vector<1x32xf32> to vector<128x32xf32>
    %88 = arith.addf %83, %87 : vector<128x32xf32>
    %cst_32 = arith.constant dense<0.000000e+00> : vector<128xf32>
    %89 = vector.multi_reduction <add>, %88, %cst_32 [1] : vector<128x32xf32> to vector<128xf32>
    %90 = vector.shape_cast %89 : vector<128xf32> to vector<128x1xf32>
    %cst_33 = arith.constant 3.200000e+01 : f32
    %91 = vector.broadcast %cst_33 : f32 to vector<128x1xf32>
    %92 = arith.divf %90, %91 : vector<128x1xf32>
    %93 = vector.broadcast %92 : vector<128x1xf32> to vector<128x32xf32>
    %94 = arith.subf %88, %93 : vector<128x32xf32>
    %95 = arith.mulf %94, %94 : vector<128x32xf32>
    %cst_34 = arith.constant dense<0.000000e+00> : vector<128xf32>
    %96 = vector.multi_reduction <add>, %95, %cst_34 [1] : vector<128x32xf32> to vector<128xf32>
    %97 = vector.shape_cast %96 : vector<128xf32> to vector<128x1xf32>
    %cst_35 = arith.constant 3.200000e+01 : f32
    %98 = vector.broadcast %cst_35 : f32 to vector<128x1xf32>
    %99 = arith.divf %97, %98 : vector<128x1xf32>
    %100 = vector.broadcast %92 : vector<128x1xf32> to vector<128x32xf32>
    %101 = arith.subf %88, %100 : vector<128x32xf32>
    %cst_36 = arith.constant 9.99999974E-6 : f32
    %102 = vector.broadcast %cst_36 : f32 to vector<128x1xf32>
    %103 = arith.addf %99, %102 : vector<128x1xf32>
    %104 = math.rsqrt %103 : vector<128x1xf32>
    %105 = vector.broadcast %104 : vector<128x1xf32> to vector<128x32xf32>
    %106 = arith.mulf %101, %105 : vector<128x32xf32>
    %c0_37 = arith.constant 0 : index
    %c0_38 = arith.constant 0 : index
    %107 = vector.load %arg8[%c0_37, %c0_38] : memref<1x32xf32, #tpu.memory_space<vmem>>, vector<1x32xf32>
    %108 = vector.shape_cast %107 : vector<1x32xf32> to vector<32xf32>
    %109 = vector.shape_cast %108 : vector<32xf32> to vector<1x32xf32>
    %110 = vector.broadcast %109 : vector<1x32xf32> to vector<128x32xf32>
    %111 = arith.mulf %106, %110 : vector<128x32xf32>
    %c0_39 = arith.constant 0 : index
    %c0_40 = arith.constant 0 : index
    %112 = vector.load %arg9[%c0_39, %c0_40] : memref<1x32xf32, #tpu.memory_space<vmem>>, vector<1x32xf32>
    %113 = vector.shape_cast %112 : vector<1x32xf32> to vector<32xf32>
    %114 = vector.shape_cast %113 : vector<32xf32> to vector<1x32xf32>
    %115 = vector.broadcast %114 : vector<1x32xf32> to vector<128x32xf32>
    %116 = arith.addf %111, %115 : vector<128x32xf32>
    %cst_41 = arith.constant 0.000000e+00 : f32
    %117 = vector.broadcast %cst_41 : f32 to vector<128x32xf32>
    %118 = arith.maximumf %116, %117 : vector<128x32xf32>
    %119 = vector.shape_cast %118 : vector<128x32xf32> to vector<8x16x32xf32>
    %c0_42 = arith.constant 0 : index
    %c0_43 = arith.constant 0 : index
    %120 = vector.load %arg10[%c0_42, %c0_43] : memref<1x32xf32, #tpu.memory_space<vmem>>, vector<1x32xf32>
    %121 = vector.shape_cast %120 : vector<1x32xf32> to vector<32xf32>
    %122 = vector.shape_cast %121 : vector<32xf32> to vector<1x1x32xf32>
    %123 = vector.broadcast %122 : vector<1x1x32xf32> to vector<8x16x32xf32>
    %124 = arith.mulf %119, %123 : vector<8x16x32xf32>
    %cst_44 = arith.constant dense<0.000000e+00> : vector<8x16xf32>
    %125 = vector.multi_reduction <add>, %124, %cst_44 [2] : vector<8x16x32xf32> to vector<8x16xf32>
    %c0_45 = arith.constant 0 : index
    %c0_46 = arith.constant 0 : index
    %126 = vector.load %arg11[%c0_45, %c0_46] : memref<1x1xf32, #tpu.memory_space<vmem>>, vector<1x1xf32>
    %127 = vector.extract %126[0, 0] : f32 from vector<1x1xf32>
    %128 = vector.broadcast %127 : f32 to vector<8x16xf32>
    %129 = arith.addf %125, %128 : vector<8x16xf32>
    %cst_47 = arith.constant 0.000000e+00 : f32
    %130 = vector.broadcast %cst_47 : f32 to vector<8x16xf32>
    %131 = arith.maximumf %129, %130 : vector<8x16xf32>
    %c0_48 = arith.constant 0 : index
    %c0_49 = arith.constant 0 : index
    %132 = vector.load %arg12[%c0_48, %c0_49] : memref<8x16xf32, #tpu.memory_space<vmem>>, vector<8x16xf32>
    tpu.vector_store %arg12[%c0_48, %c0_49], %131 {strides = array<i32>} : memref<8x16xf32, #tpu.memory_space<vmem>>, vector<8x16xf32>,
    return
  }
  func.func @transform_0(%arg0: i32) -> (i32, i32, i32) {
    %c0_i32 = arith.constant 0 : i32
    %c0_i32_0 = arith.constant 0 : i32
    %c0_i32_1 = arith.constant 0 : i32
    return %arg0, %c0_i32, %c0_i32_0 : i32, i32, i32
  }
  func.func @transform_1(%arg0: i32) -> (i32, i32) {
    %c0_i32 = arith.constant 0 : i32
    %c0_i32_0 = arith.constant 0 : i32
    %c0_i32_1 = arith.constant 0 : i32
    return %c0_i32, %c0_i32_0 : i32, i32
  }
  func.func @transform_2(%arg0: i32) -> (i32, i32) {
    %c0_i32 = arith.constant 0 : i32
    %c0_i32_0 = arith.constant 0 : i32
    %c0_i32_1 = arith.constant 0 : i32
    return %c0_i32, %c0_i32_0 : i32, i32
  }
  func.func @transform_3(%arg0: i32) -> (i32, i32) {
    %c0_i32 = arith.constant 0 : i32
    %c0_i32_0 = arith.constant 0 : i32
    %c0_i32_1 = arith.constant 0 : i32
    return %c0_i32, %c0_i32_0 : i32, i32
  }
  func.func @transform_4(%arg0: i32) -> (i32, i32) {
    %c0_i32 = arith.constant 0 : i32
    %c0_i32_0 = arith.constant 0 : i32
    %c0_i32_1 = arith.constant 0 : i32
    return %c0_i32, %c0_i32_0 : i32, i32
  }
  func.func @transform_5(%arg0: i32) -> (i32, i32) {
    %c0_i32 = arith.constant 0 : i32
    %c0_i32_0 = arith.constant 0 : i32
    %c0_i32_1 = arith.constant 0 : i32
    return %c0_i32, %c0_i32_0 : i32, i32
  }
  func.func @transform_6(%arg0: i32) -> (i32, i32) {
    %c0_i32 = arith.constant 0 : i32
    %c0_i32_0 = arith.constant 0 : i32
    %c0_i32_1 = arith.constant 0 : i32
    return %c0_i32, %c0_i32_0 : i32, i32
  }
  func.func @transform_7(%arg0: i32) -> (i32, i32) {
    %c0_i32 = arith.constant 0 : i32
    %c0_i32_0 = arith.constant 0 : i32
    %c0_i32_1 = arith.constant 0 : i32
    return %c0_i32, %c0_i32_0 : i32, i32
  }
  func.func @transform_8(%arg0: i32) -> (i32, i32) {
    %c0_i32 = arith.constant 0 : i32
    %c0_i32_0 = arith.constant 0 : i32
    %c0_i32_1 = arith.constant 0 : i32
    return %c0_i32, %c0_i32_0 : i32, i32
  }
  func.func @transform_9(%arg0: i32) -> (i32, i32) {
    %c0_i32 = arith.constant 0 : i32
    %c0_i32_0 = arith.constant 0 : i32
    %c0_i32_1 = arith.constant 0 : i32
    return %c0_i32, %c0_i32_0 : i32, i32
  }
  func.func @transform_10(%arg0: i32) -> (i32, i32) {
    %c0_i32 = arith.constant 0 : i32
    %c0_i32_0 = arith.constant 0 : i32
    %c0_i32_1 = arith.constant 0 : i32
    return %c0_i32, %c0_i32_0 : i32, i32
  }
  func.func @transform_11(%arg0: i32) -> (i32, i32) {
    %c0_i32 = arith.constant 0 : i32
    %c0_i32_0 = arith.constant 0 : i32
    return %arg0, %c0_i32 : i32, i32
  }
}

</mosaic_0001>

<llo_original>
// kernel: tpu_custom_call.1
$region0: #{tpu_custom_call.1}
  #allocation0 [shape = 'u32[]', space=smem, size = 0x4, offset = 0x4, fixed_abs, tag = 'smem constant byte address 0x4 - core index']
  #allocation1 [shape = 'u32[144,128]{1,0:T(1,128)}', space=vmem, size = 0x12000, scoped, tag = 'internal scratch']
  #allocation2 [shape = 'f32[1,1]{1,0:T(1,128)S(1)}', space=vmem, size = 0x200, scoped, tag = 'scoped memory for tpu_custom_call.1']
  %s0 = inlined_call_operand.vmem [shape: f32[16,16,32], index: 0, kind: input, shape index: {}]
  %s1 = inlined_call_operand.vmem [shape: f32[96,32], index: 1, kind: input, shape index: {}]
  %s2 = inlined_call_operand.vmem [shape: f32[1,32], index: 2, kind: input, shape index: {}]
  %s3 = inlined_call_operand.vmem [shape: f32[1,32], index: 3, kind: input, shape index: {}]
  %s4 = inlined_call_operand.vmem [shape: f32[1,32], index: 4, kind: input, shape index: {}]
  %s5 = inlined_call_operand.vmem [shape: f32[96,32], index: 5, kind: input, shape index: {}]
  %s6 = inlined_call_operand.vmem [shape: f32[1,32], index: 6, kind: input, shape index: {}]
  %s7 = inlined_call_operand.vmem [shape: f32[1,32], index: 7, kind: input, shape index: {}]
  %s8 = inlined_call_operand.vmem [shape: f32[1,32], index: 8, kind: input, shape index: {}]
  %s9 = inlined_call_operand.vmem [shape: f32[1,32], index: 9, kind: input, shape index: {}]
  %s10 = inlined_call_operand.<no memory space> [shape: f32[1,1], index: 10, kind: input, shape index: {}]
  %s11 = inlined_call_operand.hbm [shape: f32[16,16], index: 11, kind: output, shape index: {}]
  %s12 = sld [smem:[#allocation0]]
  $region77: #{tpu_custom_call.1} parent=0
    _
  %s14 = ssub.s32 1, %s12
  %s15 = scalar_select 0, %s14, %s12
  %v16 = vstv %s10
  %17 = vst [vmem:[#allocation2] sm:$0x1] %v16
  $region1: #{tpu_custom_call.1} parent=0
    #allocation3 [shape = 'u8[8192]{0}', space=vmem, size = 0x2000, scoped, tag = 'output window, operand 0']
    #allocation4 [shape = 's32[2]{0}', space=sflag, size = 0x8, scoped, tag = 'scoped memory for tpu_custom_call.1']
    %18 = vsyncpa [#allocation4], 0
    %s19 = scalar_lea.sflag [#allocation4], 1
    %20 = vsyncpa %s19, 0
    loop: start=0, step=1, limit=4
    $region2: #{tpu_custom_call.1} parent=1 // loop_pre_header
      _
    $region3: #{tpu_custom_call.1} parent=1 // loop_header
      %s22 = sphi 0, %s26
      %p23 = scmp.ge.s32.totalorder %s22, 4
      %s32 = sphi 0, %s34
      %s35 = sphi 0, %s32
      %s36 = sphi 0, %s35
      %s52 = sphi 0, %s36
      %s56 = sphi 0, %s56
      %s58 = sphi 0, %s56
      %s59 = sphi 0, %s58
      %s73 = sphi 0, %s59
      %s77 = sphi 0, %s77
      %s79 = sphi 0, %s77
      %s80 = sphi 0, %s79
      %s94 = sphi 0, %s80
      %s98 = sphi 0, %s98
      %s100 = sphi 0, %s98
      %s101 = sphi 0, %s100
      %s115 = sphi 0, %s101
      %s119 = sphi 0, %s119
      %s121 = sphi 0, %s119
      %s122 = sphi 0, %s121
      %s136 = sphi 0, %s122
      %s140 = sphi 0, %s140
      %s142 = sphi 0, %s140
      %s143 = sphi 0, %s142
      %s157 = sphi 0, %s143
      %s161 = sphi 0, %s161
      %s163 = sphi 0, %s161
      %s164 = sphi 0, %s163
      %s178 = sphi 0, %s164
      %s182 = sphi 0, %s182
      %s184 = sphi 0, %s182
      %s185 = sphi 0, %s184
      %s199 = sphi 0, %s185
      %s203 = sphi 0, %s203
      %s205 = sphi 0, %s203
      %s206 = sphi 0, %s205
      %s220 = sphi 0, %s206
      %s224 = sphi 0, %s224
      %s226 = sphi 0, %s224
      %s227 = sphi 0, %s226
      %s241 = sphi 0, %s227
      %s245 = sphi 0, %s245
      %s247 = sphi 0, %s245
      %s248 = sphi 0, %s247
      %s262 = sphi 0, %s248
      %s268 = sphi 0, %s270
      %s271 = sphi 0, %s268
      %s272 = sphi 0, %s271
      %s288 = sphi 0, %s272
    $region4: #{tpu_custom_call.1} parent=1 // loop_header_branch
      %25 = sbr.rel (%p23) target = $region8
    $region5: #{tpu_custom_call.1} parent=1 // loop_body
      %s27 = ssub.s32 %s22, 1
      %s28 = ssub.s32 %s22, 2
      %s29 = sadd.s32 %s22, 1
      %s30 = ssub.s32 %s22, %s29
      %p31 = scmp.eq.s32.totalorder %s30, 0
      %s33 = sadd.s32 %s32, 1
      %s34 = scalar_select %p31, %s32, %s33
      %p37 = pneg %p31
      %p38 = scmp.eq.s32.totalorder %s22, 1
      %p39 = por %p37, %p38
      %p40 = scmp.ne.s32.totalorder %s32, %s35
      %p41 = scmp.eq.s32.totalorder %s22, 0
      %p42 = por %p40, %p41
      %p43 = scmp.ne.s32.totalorder %s32, %s35
      %p44 = scmp.eq.s32.totalorder %s27, 1
      %p45 = por %p43, %p44
      %p46 = scmp.ne.s32.totalorder %s35, %s36
      %p47 = scmp.eq.s32.totalorder %s27, 0
      %p48 = por %p46, %p47
      %p49 = scmp.ne.s32.totalorder %s35, %s36
      %p50 = scmp.eq.s32.totalorder %s28, 1
      %p51 = por %p49, %p50
      %p53 = scmp.ne.s32.totalorder %s36, %s52
      %p54 = scmp.eq.s32.totalorder %s28, 0
      %p55 = por %p53, %p54
      %s57 = sadd.s32 %s56, 1
      %p60 = scmp.eq.s32.totalorder %s22, 1
      %p61 = scmp.ne.s32.totalorder %s56, %s58
      %p62 = scmp.eq.s32.totalorder %s22, 0
      %p63 = por %p61, %p62
      %p64 = scmp.ne.s32.totalorder %s56, %s58
      %p65 = scmp.eq.s32.totalorder %s27, 1
      %p66 = por %p64, %p65
      %p67 = scmp.ne.s32.totalorder %s58, %s59
      %p68 = scmp.eq.s32.totalorder %s27, 0
      %p69 = por %p67, %p68
      %p70 = scmp.ne.s32.totalorder %s58, %s59
      %p71 = scmp.eq.s32.totalorder %s28, 1
      %p72 = por %p70, %p71
      %p74 = scmp.ne.s32.totalorder %s59, %s73
      %p75 = scmp.eq.s32.totalorder %s28, 0
      %p76 = por %p74, %p75
      %s78 = sadd.s32 %s77, 1
      %p81 = scmp.eq.s32.totalorder %s22, 1
      %p82 = scmp.ne.s32.totalorder %s77, %s79
      %p83 = scmp.eq.s32.totalorder %s22, 0
      %p84 = por %p82, %p83
      %p85 = scmp.ne.s32.totalorder %s77, %s79
      %p86 = scmp.eq.s32.totalorder %s27, 1
      %p87 = por %p85, %p86
      %p88 = scmp.ne.s32.totalorder %s79, %s80
      %p89 = scmp.eq.s32.totalorder %s27, 0
      %p90 = por %p88, %p89
      %p91 = scmp.ne.s32.totalorder %s79, %s80
      %p92 = scmp.eq.s32.totalorder %s28, 1
      %p93 = por %p91, %p92
      %p95 = scmp.ne.s32.totalorder %s80, %s94
      %p96 = scmp.eq.s32.totalorder %s28, 0
      %p97 = por %p95, %p96
      %s99 = sadd.s32 %s98, 1
      %p102 = scmp.eq.s32.totalorder %s22, 1
      %p103 = scmp.ne.s32.totalorder %s98, %s100
      %p104 = scmp.eq.s32.totalorder %s22, 0
      %p105 = por %p103, %p104
      %p106 = scmp.ne.s32.totalorder %s98, %s100
      %p107 = scmp.eq.s32.totalorder %s27, 1
      %p108 = por %p106, %p107
      %p109 = scmp.ne.s32.totalorder %s100, %s101
      %p110 = scmp.eq.s32.totalorder %s27, 0
      %p111 = por %p109, %p110
      %p112 = scmp.ne.s32.totalorder %s100, %s101
      %p113 = scmp.eq.s32.totalorder %s28, 1
      %p114 = por %p112, %p113
      %p116 = scmp.ne.s32.totalorder %s101, %s115
      %p117 = scmp.eq.s32.totalorder %s28, 0
      %p118 = por %p116, %p117
      %s120 = sadd.s32 %s119, 1
      %p123 = scmp.eq.s32.totalorder %s22, 1
      %p124 = scmp.ne.s32.totalorder %s119, %s121
      %p125 = scmp.eq.s32.totalorder %s22, 0
      %p126 = por %p124, %p125
      %p127 = scmp.ne.s32.totalorder %s119, %s121
      %p128 = scmp.eq.s32.totalorder %s27, 1
      %p129 = por %p127, %p128
      %p130 = scmp.ne.s32.totalorder %s121, %s122
      %p131 = scmp.eq.s32.totalorder %s27, 0
      %p132 = por %p130, %p131
      %p133 = scmp.ne.s32.totalorder %s121, %s122
      %p134 = scmp.eq.s32.totalorder %s28, 1
      %p135 = por %p133, %p134
      %p137 = scmp.ne.s32.totalorder %s122, %s136
      %p138 = scmp.eq.s32.totalorder %s28, 0
      %p139 = por %p137, %p138
      %s141 = sadd.s32 %s140, 1
      %p144 = scmp.eq.s32.totalorder %s22, 1
      %p145 = scmp.ne.s32.totalorder %s140, %s142
      %p146 = scmp.eq.s32.totalorder %s22, 0
      %p147 = por %p145, %p146
      %p148 = scmp.ne.s32.totalorder %s140, %s142
      %p149 = scmp.eq.s32.totalorder %s27, 1
      %p150 = por %p148, %p149
      %p151 = scmp.ne.s32.totalorder %s142, %s143
      %p152 = scmp.eq.s32.totalorder %s27, 0
      %p153 = por %p151, %p152
      %p154 = scmp.ne.s32.totalorder %s142, %s143
      %p155 = scmp.eq.s32.totalorder %s28, 1
      %p156 = por %p154, %p155
      %p158 = scmp.ne.s32.totalorder %s143, %s157
      %p159 = scmp.eq.s32.totalorder %s28, 0
      %p160 = por %p158, %p159
      %s162 = sadd.s32 %s161, 1
      %p165 = scmp.eq.s32.totalorder %s22, 1
      %p166 = scmp.ne.s32.totalorder %s161, %s163
      %p167 = scmp.eq.s32.totalorder %s22, 0
      %p168 = por %p166, %p167
      %p169 = scmp.ne.s32.totalorder %s161, %s163
      %p170 = scmp.eq.s32.totalorder %s27, 1
      %p171 = por %p169, %p170
      %p172 = scmp.ne.s32.totalorder %s163, %s164
      %p173 = scmp.eq.s32.totalorder %s27, 0
      %p174 = por %p172, %p173
      %p175 = scmp.ne.s32.totalorder %s163, %s164
      %p176 = scmp.eq.s32.totalorder %s28, 1
      %p177 = por %p175, %p176
      %p179 = scmp.ne.s32.totalorder %s164, %s178
      %p180 = scmp.eq.s32.totalorder %s28, 0
      %p181 = por %p179, %p180
      %s183 = sadd.s32 %s182, 1
      %p186 = scmp.eq.s32.totalorder %s22, 1
      %p187 = scmp.ne.s32.totalorder %s182, %s184
      %p188 = scmp.eq.s32.totalorder %s22, 0
      %p189 = por %p187, %p188
      %p190 = scmp.ne.s32.totalorder %s182, %s184
      %p191 = scmp.eq.s32.totalorder %s27, 1
      %p192 = por %p190, %p191
      %p193 = scmp.ne.s32.totalorder %s184, %s185
      %p194 = scmp.eq.s32.totalorder %s27, 0
      %p195 = por %p193, %p194
      %p196 = scmp.ne.s32.totalorder %s184, %s185
      %p197 = scmp.eq.s32.totalorder %s28, 1
      %p198 = por %p196, %p197
      %p200 = scmp.ne.s32.totalorder %s185, %s199
      %p201 = scmp.eq.s32.totalorder %s28, 0
      %p202 = por %p200, %p201
      %s204 = sadd.s32 %s203, 1
      %p207 = scmp.eq.s32.totalorder %s22, 1
      %p208 = scmp.ne.s32.totalorder %s203, %s205
      %p209 = scmp.eq.s32.totalorder %s22, 0
      %p210 = por %p208, %p209
      %p211 = scmp.ne.s32.totalorder %s203, %s205
      %p212 = scmp.eq.s32.totalorder %s27, 1
      %p213 = por %p211, %p212
      %p214 = scmp.ne.s32.totalorder %s205, %s206
      %p215 = scmp.eq.s32.totalorder %s27, 0
      %p216 = por %p214, %p215
      %p217 = scmp.ne.s32.totalorder %s205, %s206
      %p218 = scmp.eq.s32.totalorder %s28, 1
      %p219 = por %p217, %p218
      %p221 = scmp.ne.s32.totalorder %s206, %s220
      %p222 = scmp.eq.s32.totalorder %s28, 0
      %p223 = por %p221, %p222
      %s225 = sadd.s32 %s224, 1
      %p228 = scmp.eq.s32.totalorder %s22, 1
      %p229 = scmp.ne.s32.totalorder %s224, %s226
      %p230 = scmp.eq.s32.totalorder %s22, 0
      %p231 = por %p229, %p230
      %p232 = scmp.ne.s32.totalorder %s224, %s226
      %p233 = scmp.eq.s32.totalorder %s27, 1
      %p234 = por %p232, %p233
      %p235 = scmp.ne.s32.totalorder %s226, %s227
      %p236 = scmp.eq.s32.totalorder %s27, 0
      %p237 = por %p235, %p236
      %p238 = scmp.ne.s32.totalorder %s226, %s227
      %p239 = scmp.eq.s32.totalorder %s28, 1
      %p240 = por %p238, %p239
      %p242 = scmp.ne.s32.totalorder %s227, %s241
      %p243 = scmp.eq.s32.totalorder %s28, 0
      %p244 = por %p242, %p243
      %s246 = sadd.s32 %s245, 1
      %p249 = scmp.eq.s32.totalorder %s22, 1
      %p250 = scmp.ne.s32.totalorder %s245, %s247
      %p251 = scmp.eq.s32.totalorder %s22, 0
      %p252 = por %p250, %p251
      %p253 = scmp.ne.s32.totalorder %s245, %s247
      %p254 = scmp.eq.s32.totalorder %s27, 1
      %p255 = por %p253, %p254
      %p256 = scmp.ne.s32.totalorder %s247, %s248
      %p257 = scmp.eq.s32.totalorder %s27, 0
      %p258 = por %p256, %p257
      %p259 = scmp.ne.s32.totalorder %s247, %s248
      %p260 = scmp.eq.s32.totalorder %s28, 1
      %p261 = por %p259, %p260
      %p263 = scmp.ne.s32.totalorder %s248, %s262
      %p264 = scmp.eq.s32.totalorder %s28, 0
      %p265 = por %p263, %p264
      %s266 = ssub.s32 %s22, %s29
      %p267 = scmp.eq.s32.totalorder %s266, 0
      %s269 = sadd.s32 %s268, 1
      %s270 = scalar_select %p267, %s268, %s269
      %p273 = pneg %p267
      %p274 = scmp.eq.s32.totalorder %s22, 1
      %p275 = por %p273, %p274
      %p276 = scmp.ne.s32.totalorder %s268, %s271
      %p277 = scmp.eq.s32.totalorder %s22, 0
      %p278 = por %p276, %p277
      %p279 = scmp.ne.s32.totalorder %s268, %s271
      %p280 = scmp.eq.s32.totalorder %s27, 1
      %p281 = por %p279, %p280
      %p282 = scmp.ne.s32.totalorder %s271, %s272
      %p283 = scmp.eq.s32.totalorder %s27, 0
      %p284 = por %p282, %p283
      %p285 = scmp.ne.s32.totalorder %s271, %s272
      %p286 = scmp.eq.s32.totalorder %s28, 1
      %p287 = por %p285, %p286
      %p289 = scmp.ne.s32.totalorder %s272, %s288
      %p290 = scmp.eq.s32.totalorder %s28, 0
      %p291 = por %p289, %p290
      %p292 = scmp.le.s32.totalorder 1, %s22
      %p293 = scmp.lt.s32.totalorder %s22, 3
      %p294 = pnand %p292, %p293
      %p295 = pneg %p294
      // Predicated region
      $region9: #{tpu_custom_call.1} parent=5 // pred_check
        _
      $region10: #{tpu_custom_call.1} parent=5 // pred_check_branch
        %297 = sbr.rel (%p294) target = $region12
      $region11: #{tpu_custom_call.1} parent=5 // pred_region
        %s298 = ssub.s32 %s22, 1
        // Predicated region
        $region13: #{tpu_custom_call.1} parent=11 // pred_check
          %p299 = pneg %p69
        $region14: #{tpu_custom_call.1} parent=11 // pred_check_branch
          %301 = sbr.rel (%p299) target = $region16
        $region15: #{tpu_custom_call.1} parent=11 // pred_region
          _
        $region16: #{tpu_custom_call.1} parent=11 // pred_fallthru
          _
        // Predicated region
        $region17: #{tpu_custom_call.1} parent=11 // pred_check
          %p302 = pneg %p90
        $region18: #{tpu_custom_call.1} parent=11 // pred_check_branch
          %304 = sbr.rel (%p302) target = $region20
        $region19: #{tpu_custom_call.1} parent=11 // pred_region
          _
        $region20: #{tpu_custom_call.1} parent=11 // pred_fallthru
          _
        // Predicated region
        $region21: #{tpu_custom_call.1} parent=11 // pred_check
          %p305 = pneg %p111
        $region22: #{tpu_custom_call.1} parent=11 // pred_check_branch
          %307 = sbr.rel (%p305) target = $region24
        $region23: #{tpu_custom_call.1} parent=11 // pred_region
          _
        $region24: #{tpu_custom_call.1} parent=11 // pred_fallthru
          _
        // Predicated region
        $region25: #{tpu_custom_call.1} parent=11 // pred_check
          %p308 = pneg %p132
        $region26: #{tpu_custom_call.1} parent=11 // pred_check_branch
          %310 = sbr.rel (%p308) target = $region28
        $region27: #{tpu_custom_call.1} parent=11 // pred_region
          _
        $region28: #{tpu_custom_call.1} parent=11 // pred_fallthru
          _
        // Predicated region
        $region29: #{tpu_custom_call.1} parent=11 // pred_check
          %p311 = pneg %p153
        $region30: #{tpu_custom_call.1} parent=11 // pred_check_branch
          %313 = sbr.rel (%p311) target = $region32
        $region31: #{tpu_custom_call.1} parent=11 // pred_region
          _
        $region32: #{tpu_custom_call.1} parent=11 // pred_fallthru
          _
        // Predicated region
        $region33: #{tpu_custom_call.1} parent=11 // pred_check
          %p314 = pneg %p174
        $region34: #{tpu_custom_call.1} parent=11 // pred_check_branch
          %316 = sbr.rel (%p314) target = $region36
        $region35: #{tpu_custom_call.1} parent=11 // pred_region
          _
        $region36: #{tpu_custom_call.1} parent=11 // pred_fallthru
          _
        // Predicated region
        $region37: #{tpu_custom_call.1} parent=11 // pred_check
          %p317 = pneg %p195
        $region38: #{tpu_custom_call.1} parent=11 // pred_check_branch
          %319 = sbr.rel (%p317) target = $region40
        $region39: #{tpu_custom_call.1} parent=11 // pred_region
          _
        $region40: #{tpu_custom_call.1} parent=11 // pred_fallthru
          _
        // Predicated region
        $region41: #{tpu_custom_call.1} parent=11 // pred_check
          %p320 = pneg %p216
        $region42: #{tpu_custom_call.1} parent=11 // pred_check_branch
          %322 = sbr.rel (%p320) target = $region44
        $region43: #{tpu_custom_call.1} parent=11 // pred_region
          _
        $region44: #{tpu_custom_call.1} parent=11 // pred_fallthru
          _
        // Predicated region
        $region45: #{tpu_custom_call.1} parent=11 // pred_check
          %p323 = pneg %p237
        $region46: #{tpu_custom_call.1} parent=11 // pred_check_branch
          %325 = sbr.rel (%p323) target = $region48
        $region47: #{tpu_custom_call.1} parent=11 // pred_region
          _
        $region48: #{tpu_custom_call.1} parent=11 // pred_fallthru
          _
        // Predicated region
        $region49: #{tpu_custom_call.1} parent=11 // pred_check
          %p326 = pneg %p258
        $region50: #{tpu_custom_call.1} parent=11 // pred_check_branch
          %328 = sbr.rel (%p326) target = $region52
        $region51: #{tpu_custom_call.1} parent=11 // pred_region
          _
        $region52: #{tpu_custom_call.1} parent=11 // pred_fallthru
          _
      $region12: #{tpu_custom_call.1} parent=5 // pred_fallthru
        _
      %p329 = scmp.lt.s32.totalorder %s22, 2
      // Predicated region
      $region53: #{tpu_custom_call.1} parent=5 // pred_check
        %p330 = pneg %p329
      $region54: #{tpu_custom_call.1} parent=5 // pred_check_branch
        %332 = sbr.rel (%p330) target = $region56
      $region55: #{tpu_custom_call.1} parent=5 // pred_region
        // Predicated region
        $region57: #{tpu_custom_call.1} parent=55 // pred_check
          %p333 = pneg %p42
        $region58: #{tpu_custom_call.1} parent=55 // pred_check_branch
          %335 = sbr.rel (%p333) target = $region60
        $region59: #{tpu_custom_call.1} parent=55 // pred_region
          %s336 = smul.u32 8, %s22
          %p337 = scmp.lt.s32.totalorder %s336, 15
          %s338 = scalar_select %p337, %s336, 15
          %s339 = smul.addr %s338, 2
          %s340 = smul.addr %s339, 8
          %s341 = scalar_lea.vmem %s0, %s340
          %s342 = smul.u32 8, %s22
        $region60: #{tpu_custom_call.1} parent=55 // pred_fallthru
          _
      $region56: #{tpu_custom_call.1} parent=5 // pred_fallthru
        _
      %p343 = scmp.le.s32.totalorder 1, %s22
      %p344 = scmp.lt.s32.totalorder %s22, 3
      %p345 = pnand %p343, %p344
      %p346 = pneg %p345
      // Predicated region
      $region61: #{tpu_custom_call.1} parent=5 // pred_check
        _
      $region62: #{tpu_custom_call.1} parent=5 // pred_check_branch
        %348 = sbr.rel (%p345) target = $region64
      $region63: #{tpu_custom_call.1} parent=5 // pred_region
        %s349 = ssub.s32 %s22, 1
        %s350 = smul.u32 8, %s27
        %p351 = scmp.lt.s32.totalorder %s350, 15
        %s352 = scalar_select %p351, %s350, 15
        %s353 = smul.addr %s352, 2
        %s354 = smul.addr %s353, 8
        %s355 = scalar_lea.vmem %s0, %s354
        %p356 = pneg %p48
        %p357 = pneg %p45
        %p358 = pneg %p69
        %p359 = pneg %p66
        %p360 = pneg %p90
        %p361 = pneg %p87
        %p362 = pneg %p111
        %p363 = pneg %p108
        %p364 = pneg %p132
        %p365 = pneg %p129
        %p366 = pneg %p153
        %p367 = pneg %p150
        %p368 = pneg %p174
        %p369 = pneg %p171
        %p370 = pneg %p195
        %p371 = pneg %p192
        %p372 = pneg %p216
        %p373 = pneg %p213
        %p374 = pneg %p237
        %p375 = pneg %p234
        %p376 = pneg %p258
        %p377 = pneg %p255
        %p378 = pneg %p284
        %p379 = pneg %p281
        %s380 = sand.u32 %s271, 1
        %s381 = scalar_lea.sflag [#allocation4], %s380
        %s382 = sand.u32 %s271, 1
        %s383 = smul.addr %s382, 8
        %s384 = scalar_lea.vmem [#allocation3], %s383
        %s385 = smul.u32 8, %s27
        %p386 = scmp.lt.s32.totalorder %s385, 15
        %s387 = scalar_select %p386, %s385, 15
        %s388 = smul.addr %s387, 2
        %s389 = smul.addr %s388, 8
        %s390 = scalar_lea.vmem %s0, %s389
        %s391 = smul.u32 8, %s27
        %v392 = vlaneseq
        %v393 = vshrl.u32 %v392, 7
        %v394 = vadd.s32 %v393, 8
        %v395 = vadd.s32 %v393, 16
        %v396 = vadd.s32 %v393, 24
        %v397 = vadd.s32 %v393, 32
        %v398 = vadd.s32 %v393, 40
        %v399 = vadd.s32 %v393, 48
        %v400 = vadd.s32 %v393, 56
        %v401 = vadd.s32 %v393, 64
        %v402 = vadd.s32 %v393, 72
        %v403 = vadd.s32 %v393, 80
        %v404 = vadd.s32 %v393, 88
        %v405 = vadd.s32 %v393, 96
        %v406 = vadd.s32 %v393, 104
        %v407 = vadd.s32 %v393, 112
        %v408 = vadd.s32 %v393, 120
        %vm409 = vcmp.lt.s32.totalorder %v393, 0
        %v410 = vsub.s32 0, %v393
        %v411 = vsel %vm409, %v410, %v393
        %v412 = vshrl.u32 %v411, 4
        %v413 = vand.u32 %v411, 15
        %v414 = vsub.s32 0, %v413
        %v415 = vsel %vm409, %v414, %v413
        %vm416 = vcmp.lt.s32.totalorder %v394, 0
        %v417 = vsub.s32 0, %v394
        %v418 = vsel %vm416, %v417, %v394
        %v419 = vshrl.u32 %v418, 4
        %v420 = vand.u32 %v418, 15
        %v421 = vsub.s32 0, %v420
        %v422 = vsel %vm416, %v421, %v420
        %vm423 = vcmp.lt.s32.totalorder %v395, 0
        %v424 = vsub.s32 0, %v395
        %v425 = vsel %vm423, %v424, %v395
        %v426 = vshrl.u32 %v425, 4
        %v427 = vand.u32 %v425, 15
        %v428 = vsub.s32 0, %v427
        %v429 = vsel %vm423, %v428, %v427
        %vm430 = vcmp.lt.s32.totalorder %v396, 0
        %v431 = vsub.s32 0, %v396
        %v432 = vsel %vm430, %v431, %v396
        %v433 = vshrl.u32 %v432, 4
        %v434 = vand.u32 %v432, 15
        %v435 = vsub.s32 0, %v434
        %v436 = vsel %vm430, %v435, %v434
        %vm437 = vcmp.lt.s32.totalorder %v397, 0
        %v438 = vsub.s32 0, %v397
        %v439 = vsel %vm437, %v438, %v397
        %v440 = vshrl.u32 %v439, 4
        %v441 = vand.u32 %v439, 15
        %v442 = vsub.s32 0, %v441
        %v443 = vsel %vm437, %v442, %v441
        %vm444 = vcmp.lt.s32.totalorder %v398, 0
        %v445 = vsub.s32 0, %v398
        %v446 = vsel %vm444, %v445, %v398
        %v447 = vshrl.u32 %v446, 4
        %v448 = vand.u32 %v446, 15
        %v449 = vsub.s32 0, %v448
        %v450 = vsel %vm444, %v449, %v448
        %vm451 = vcmp.lt.s32.totalorder %v399, 0
        %v452 = vsub.s32 0, %v399
        %v453 = vsel %vm451, %v452, %v399
        %v454 = vshrl.u32 %v453, 4
        %v455 = vand.u32 %v453, 15
        %v456 = vsub.s32 0, %v455
        %v457 = vsel %vm451, %v456, %v455
        %vm458 = vcmp.lt.s32.totalorder %v400, 0
        %v459 = vsub.s32 0, %v400
        %v460 = vsel %vm458, %v459, %v400
        %v461 = vshrl.u32 %v460, 4
        %v462 = vand.u32 %v460, 15
        %v463 = vsub.s32 0, %v462
        %v464 = vsel %vm458, %v463, %v462
        %vm465 = vcmp.lt.s32.totalorder %v401, 0
        %v466 = vsub.s32 0, %v401
        %v467 = vsel %vm465, %v466, %v401
        %v468 = vshrl.u32 %v467, 4
        %v469 = vand.u32 %v467, 15
        %v470 = vsub.s32 0, %v469
        %v471 = vsel %vm465, %v470, %v469
        %vm472 = vcmp.lt.s32.totalorder %v402, 0
        %v473 = vsub.s32 0, %v402
        %v474 = vsel %vm472, %v473, %v402
        %v475 = vshrl.u32 %v474, 4
        %v476 = vand.u32 %v474, 15
        %v477 = vsub.s32 0, %v476
        %v478 = vsel %vm472, %v477, %v476
        %vm479 = vcmp.lt.s32.totalorder %v403, 0
        %v480 = vsub.s32 0, %v403
        %v481 = vsel %vm479, %v480, %v403
        %v482 = vshrl.u32 %v481, 4
        %v483 = vand.u32 %v481, 15
        %v484 = vsub.s32 0, %v483
        %v485 = vsel %vm479, %v484, %v483
        %vm486 = vcmp.lt.s32.totalorder %v404, 0
        %v487 = vsub.s32 0, %v404
        %v488 = vsel %vm486, %v487, %v404
        %v489 = vshrl.u32 %v488, 4
        %v490 = vand.u32 %v488, 15
        %v491 = vsub.s32 0, %v490
        %v492 = vsel %vm486, %v491, %v490
        %vm493 = vcmp.lt.s32.totalorder %v405, 0
        %v494 = vsub.s32 0, %v405
        %v495 = vsel %vm493, %v494, %v405
        %v496 = vshrl.u32 %v495, 4
        %v497 = vand.u32 %v495, 15
        %v498 = vsub.s32 0, %v497
        %v499 = vsel %vm493, %v498, %v497
        %vm500 = vcmp.lt.s32.totalorder %v406, 0
        %v501 = vsub.s32 0, %v406
        %v502 = vsel %vm500, %v501, %v406
        %v503 = vshrl.u32 %v502, 4
        %v504 = vand.u32 %v502, 15
        %v505 = vsub.s32 0, %v504
        %v506 = vsel %vm500, %v505, %v504
        %vm507 = vcmp.lt.s32.totalorder %v407, 0
        %v508 = vsub.s32 0, %v407
        %v509 = vsel %vm507, %v508, %v407
        %v510 = vshrl.u32 %v509, 4
        %v511 = vand.u32 %v509, 15
        %v512 = vsub.s32 0, %v511
        %v513 = vsel %vm507, %v512, %v511
        %vm514 = vcmp.lt.s32.totalorder %v408, 0
        %v515 = vsub.s32 0, %v408
        %v516 = vsel %vm514, %v515, %v408
        %v517 = vshrl.u32 %v516, 4
        %v518 = vand.u32 %v516, 15
        %v519 = vsub.s32 0, %v518
        %v520 = vsel %vm514, %v519, %v518
        %vm521 = vcmp.ne.s32.totalorder %v415, 0
        %vm522 = vcmp.ne.s32.totalorder %v422, 0
        %vm523 = vcmp.ne.s32.totalorder %v429, 0
        %vm524 = vcmp.ne.s32.totalorder %v436, 0
        %vm525 = vcmp.ne.s32.totalorder %v443, 0
        %vm526 = vcmp.ne.s32.totalorder %v450, 0
        %vm527 = vcmp.ne.s32.totalorder %v457, 0
        %vm528 = vcmp.ne.s32.totalorder %v464, 0
        %vm529 = vcmp.ne.s32.totalorder %v471, 0
        %vm530 = vcmp.ne.s32.totalorder %v478, 0
        %vm531 = vcmp.ne.s32.totalorder %v485, 0
        %vm532 = vcmp.ne.s32.totalorder %v492, 0
        %vm533 = vcmp.ne.s32.totalorder %v499, 0
        %vm534 = vcmp.ne.s32.totalorder %v506, 0
        %vm535 = vcmp.ne.s32.totalorder %v513, 0
        %vm536 = vcmp.ne.s32.totalorder %v520, 0
        %vm537 = vcmp.lt.s32.totalorder %v415, 0
        %vm538 = vcmp.lt.s32.totalorder %v422, 0
        %vm539 = vcmp.lt.s32.totalorder %v429, 0
        %vm540 = vcmp.lt.s32.totalorder %v436, 0
        %vm541 = vcmp.lt.s32.totalorder %v443, 0
        %vm542 = vcmp.lt.s32.totalorder %v450, 0
        %vm543 = vcmp.lt.s32.totalorder %v457, 0
        %vm544 = vcmp.lt.s32.totalorder %v464, 0
        %vm545 = vcmp.lt.s32.totalorder %v471, 0
        %vm546 = vcmp.lt.s32.totalorder %v478, 0
        %vm547 = vcmp.lt.s32.totalorder %v485, 0
        %vm548 = vcmp.lt.s32.totalorder %v492, 0
        %vm549 = vcmp.lt.s32.totalorder %v499, 0
        %vm550 = vcmp.lt.s32.totalorder %v506, 0
        %vm551 = vcmp.lt.s32.totalorder %v513, 0
        %vm552 = vcmp.lt.s32.totalorder %v520, 0
        %vm553 = vmand %vm537, %vm521
        %vm554 = vmand %vm538, %vm522
        %vm555 = vmand %vm539, %vm523
        %vm556 = vmand %vm540, %vm524
        %vm557 = vmand %vm541, %vm525
        %vm558 = vmand %vm542, %vm526
        %vm559 = vmand %vm543, %vm527
        %vm560 = vmand %vm544, %vm528
        %vm561 = vmand %vm545, %vm529
        %vm562 = vmand %vm546, %vm530
        %vm563 = vmand %vm547, %vm531
        %vm564 = vmand %vm548, %vm532
        %vm565 = vmand %vm549, %vm533
        %vm566 = vmand %vm550, %vm534
        %vm567 = vmand %vm551, %vm535
        %vm568 = vmand %vm552, %vm536
        %v569 = vadd.s32 %v415, 16
        %v570 = vadd.s32 %v422, 16
        %v571 = vadd.s32 %v429, 16
        %v572 = vadd.s32 %v436, 16
        %v573 = vadd.s32 %v443, 16
        %v574 = vadd.s32 %v450, 16
        %v575 = vadd.s32 %v457, 16
        %v576 = vadd.s32 %v464, 16
        %v577 = vadd.s32 %v471, 16
        %v578 = vadd.s32 %v478, 16
        %v579 = vadd.s32 %v485, 16
        %v580 = vadd.s32 %v492, 16
        %v581 = vadd.s32 %v499, 16
        %v582 = vadd.s32 %v506, 16
        %v583 = vadd.s32 %v513, 16
        %v584 = vadd.s32 %v520, 16
        %v585 = vsel %vm553, %v569, %v415
        %v586 = vsel %vm554, %v570, %v422
        %v587 = vsel %vm555, %v571, %v429
        %v588 = vsel %vm556, %v572, %v436
        %v589 = vsel %vm557, %v573, %v443
        %v590 = vsel %vm558, %v574, %v450
        %v591 = vsel %vm559, %v575, %v457
        %v592 = vsel %vm560, %v576, %v464
        %v593 = vsel %vm561, %v577, %v471
        %v594 = vsel %vm562, %v578, %v478
        %v595 = vsel %vm563, %v579, %v485
        %v596 = vsel %vm564, %v580, %v492
        %v597 = vsel %vm565, %v581, %v499
        %v598 = vsel %vm566, %v582, %v506
        %v599 = vsel %vm567, %v583, %v513
        %v600 = vsel %vm568, %v584, %v520
        %vm601 = vcmp.eq.s32.totalorder %v585, 0
        %vm602 = vcmp.eq.s32.totalorder %v586, 0
        %vm603 = vcmp.eq.s32.totalorder %v587, 0
        %vm604 = vcmp.eq.s32.totalorder %v588, 0
        %vm605 = vcmp.eq.s32.totalorder %v589, 0
        %vm606 = vcmp.eq.s32.totalorder %v590, 0
        %vm607 = vcmp.eq.s32.totalorder %v591, 0
        %vm608 = vcmp.eq.s32.totalorder %v592, 0
        %vm609 = vcmp.eq.s32.totalorder %v593, 0
        %vm610 = vcmp.eq.s32.totalorder %v594, 0
        %vm611 = vcmp.eq.s32.totalorder %v595, 0
        %vm612 = vcmp.eq.s32.totalorder %v596, 0
        %vm613 = vcmp.eq.s32.totalorder %v597, 0
        %vm614 = vcmp.eq.s32.totalorder %v598, 0
        %vm615 = vcmp.eq.s32.totalorder %v599, 0
        %vm616 = vcmp.eq.s32.totalorder %v600, 0
        %vm617 = vcmp.eq.s32.totalorder %v585, 15
        %vm618 = vcmp.eq.s32.totalorder %v586, 15
        %vm619 = vcmp.eq.s32.totalorder %v587, 15
        %vm620 = vcmp.eq.s32.totalorder %v588, 15
        %vm621 = vcmp.eq.s32.totalorder %v589, 15
        %vm622 = vcmp.eq.s32.totalorder %v590, 15
        %vm623 = vcmp.eq.s32.totalorder %v591, 15
        %vm624 = vcmp.eq.s32.totalorder %v592, 15
        %vm625 = vcmp.eq.s32.totalorder %v593, 15
        %vm626 = vcmp.eq.s32.totalorder %v594, 15
        %vm627 = vcmp.eq.s32.totalorder %v595, 15
        %vm628 = vcmp.eq.s32.totalorder %v596, 15
        %vm629 = vcmp.eq.s32.totalorder %v597, 15
        %vm630 = vcmp.eq.s32.totalorder %v598, 15
        %vm631 = vcmp.eq.s32.totalorder %v599, 15
        %vm632 = vcmp.eq.s32.totalorder %v600, 15
        %v633 = vld [vmem:[%s390] sm:$0xff]
        %v634 = vld [vmem:[%s390 + $0x8] sm:$0xff]
        %v635 = vld [vmem:[%s390 + $0x10] sm:$0xff]
        %v636 = vld [vmem:[%s390 + $0x18] sm:$0xff]
        %v637 = vld [vmem:[%s390 + $0x20] sm:$0xff]
        %v638 = vld [vmem:[%s390 + $0x28] sm:$0xff]
        %v639 = vld [vmem:[%s390 + $0x30] sm:$0xff]
        %v640 = vld [vmem:[%s390 + $0x38] sm:$0xff]
        %v641 = vld [vmem:[%s390 + $0x40] sm:$0xff]
        %v642 = vld [vmem:[%s390 + $0x48] sm:$0xff]
        %v643 = vld [vmem:[%s390 + $0x50] sm:$0xff]
        %v644 = vld [vmem:[%s390 + $0x58] sm:$0xff]
        %v645 = vld [vmem:[%s390 + $0x60] sm:$0xff]
        %v646 = vld [vmem:[%s390 + $0x68] sm:$0xff]
        %v647 = vld [vmem:[%s390 + $0x70] sm:$0xff]
        %v648 = vld [vmem:[%s390 + $0x78] sm:$0xff]
        %v649 = vrot.slane %v633, 7
        %v650 = vrot.slane %v634, 7
        %v651 = vrot.slane %v635, 7
        %v652 = vrot.slane %v636, 7
        %v653 = vrot.slane %v637, 7
        %v654 = vrot.slane %v638, 7
        %v655 = vrot.slane %v639, 7
        %v656 = vrot.slane %v640, 7
        %v657 = vrot.slane %v641, 7
        %v658 = vrot.slane %v642, 7
        %v659 = vrot.slane %v643, 7
        %v660 = vrot.slane %v644, 7
        %v661 = vrot.slane %v645, 7
        %v662 = vrot.slane %v646, 7
        %v663 = vrot.slane %v647, 7
        %v664 = vrot.slane %v648, 7
        %vm665 = vcmp.lt.s32.totalorder %v393, 1
        %v666 = vsel %vm665, %v663, %v664
        %v667 = vsel %vm665, %v662, %v663
        %v668 = vsel %vm665, %v661, %v662
        %v669 = vsel %vm665, %v660, %v661
        %v670 = vsel %vm665, %v659, %v660
        %v671 = vsel %vm665, %v658, %v659
        %v672 = vsel %vm665, %v657, %v658
        %v673 = vsel %vm665, %v656, %v657
        %v674 = vsel %vm665, %v655, %v656
        %v675 = vsel %vm665, %v654, %v655
        %v676 = vsel %vm665, %v653, %v654
        %v677 = vsel %vm665, %v652, %v653
        %v678 = vsel %vm665, %v651, %v652
        %v679 = vsel %vm665, %v650, %v651
        %v680 = vsel %vm665, %v649, %v650
        %v681 = vsel %vm665, %v664, %v649
        %v682 = vsel %vm601, 1, 0
        %v683 = vsel %vm602, 1, 0
        %v684 = vsel %vm603, 1, 0
        %v685 = vsel %vm604, 1, 0
        %v686 = vsel %vm605, 1, 0
        %v687 = vsel %vm606, 1, 0
        %v688 = vsel %vm607, 1, 0
        %v689 = vsel %vm608, 1, 0
        %v690 = vsel %vm609, 1, 0
        %v691 = vsel %vm610, 1, 0
        %v692 = vsel %vm611, 1, 0
        %v693 = vsel %vm612, 1, 0
        %v694 = vsel %vm613, 1, 0
        %v695 = vsel %vm614, 1, 0
        %v696 = vsel %vm615, 1, 0
        %v697 = vsel %vm616, 1, 0
        %vm698 = vcmp.eq.s32.totalorder %v682, 1
        %vm699 = vcmp.eq.s32.totalorder %v683, 1
        %vm700 = vcmp.eq.s32.totalorder %v684, 1
        %vm701 = vcmp.eq.s32.totalorder %v685, 1
        %vm702 = vcmp.eq.s32.totalorder %v686, 1
        %vm703 = vcmp.eq.s32.totalorder %v687, 1
        %vm704 = vcmp.eq.s32.totalorder %v688, 1
        %vm705 = vcmp.eq.s32.totalorder %v689, 1
        %vm706 = vcmp.eq.s32.totalorder %v690, 1
        %vm707 = vcmp.eq.s32.totalorder %v691, 1
        %vm708 = vcmp.eq.s32.totalorder %v692, 1
        %vm709 = vcmp.eq.s32.totalorder %v693, 1
        %vm710 = vcmp.eq.s32.totalorder %v694, 1
        %vm711 = vcmp.eq.s32.totalorder %v695, 1
        %vm712 = vcmp.eq.s32.totalorder %v696, 1
        %vm713 = vcmp.eq.s32.totalorder %v697, 1
        %v714 = vsel %vm698, 0.0, %v681
        %v715 = vsel %vm699, 0.0, %v680
        %v716 = vsel %vm700, 0.0, %v679
        %v717 = vsel %vm701, 0.0, %v678
        %v718 = vsel %vm702, 0.0, %v677
        %v719 = vsel %vm703, 0.0, %v676
        %v720 = vsel %vm704, 0.0, %v675
        %v721 = vsel %vm705, 0.0, %v674
        %v722 = vsel %vm706, 0.0, %v673
        %v723 = vsel %vm707, 0.0, %v672
        %v724 = vsel %vm708, 0.0, %v671
        %v725 = vsel %vm709, 0.0, %v670
        %v726 = vsel %vm710, 0.0, %v669
        %v727 = vsel %vm711, 0.0, %v668
        %v728 = vsel %vm712, 0.0, %v667
        %v729 = vsel %vm713, 0.0, %v666
        %v730 = vrot.slane %v633, 1
        %v731 = vrot.slane %v634, 1
        %v732 = vrot.slane %v635, 1
        %v733 = vrot.slane %v636, 1
        %v734 = vrot.slane %v637, 1
        %v735 = vrot.slane %v638, 1
        %v736 = vrot.slane %v639, 1
        %v737 = vrot.slane %v640, 1
        %v738 = vrot.slane %v641, 1
        %v739 = vrot.slane %v642, 1
        %v740 = vrot.slane %v643, 1
        %v741 = vrot.slane %v644, 1
        %v742 = vrot.slane %v645, 1
        %v743 = vrot.slane %v646, 1
        %v744 = vrot.slane %v647, 1
        %v745 = vrot.slane %v648, 1
        %vm746 = vcmp.lt.s32.totalorder %v393, 7
        %v747 = vsel %vm746, %v744, %v745
        %v748 = vsel %vm746, %v743, %v744
        %v749 = vsel %vm746, %v742, %v743
        %v750 = vsel %vm746, %v741, %v742
        %v751 = vsel %vm746, %v740, %v741
        %v752 = vsel %vm746, %v739, %v740
        %v753 = vsel %vm746, %v738, %v739
        %v754 = vsel %vm746, %v737, %v738
        %v755 = vsel %vm746, %v736, %v737
        %v756 = vsel %vm746, %v735, %v736
        %v757 = vsel %vm746, %v734, %v735
        %v758 = vsel %vm746, %v733, %v734
        %v759 = vsel %vm746, %v732, %v733
        %v760 = vsel %vm746, %v731, %v732
        %v761 = vsel %vm746, %v730, %v731
        %v762 = vsel %vm746, %v745, %v730
        %v763 = vsel %vm617, 1, 0
        %v764 = vsel %vm618, 1, 0
        %v765 = vsel %vm619, 1, 0
        %v766 = vsel %vm620, 1, 0
        %v767 = vsel %vm621, 1, 0
        %v768 = vsel %vm622, 1, 0
        %v769 = vsel %vm623, 1, 0
        %v770 = vsel %vm624, 1, 0
        %v771 = vsel %vm625, 1, 0
        %v772 = vsel %vm626, 1, 0
        %v773 = vsel %vm627, 1, 0
        %v774 = vsel %vm628, 1, 0
        %v775 = vsel %vm629, 1, 0
        %v776 = vsel %vm630, 1, 0
        %v777 = vsel %vm631, 1, 0
        %v778 = vsel %vm632, 1, 0
        %vm779 = vcmp.eq.s32.totalorder %v763, 1
        %vm780 = vcmp.eq.s32.totalorder %v764, 1
        %vm781 = vcmp.eq.s32.totalorder %v765, 1
        %vm782 = vcmp.eq.s32.totalorder %v766, 1
        %vm783 = vcmp.eq.s32.totalorder %v767, 1
        %vm784 = vcmp.eq.s32.totalorder %v768, 1
        %vm785 = vcmp.eq.s32.totalorder %v769, 1
        %vm786 = vcmp.eq.s32.totalorder %v770, 1
        %vm787 = vcmp.eq.s32.totalorder %v771, 1
        %vm788 = vcmp.eq.s32.totalorder %v772, 1
        %vm789 = vcmp.eq.s32.totalorder %v773, 1
        %vm790 = vcmp.eq.s32.totalorder %v774, 1
        %vm791 = vcmp.eq.s32.totalorder %v775, 1
        %vm792 = vcmp.eq.s32.totalorder %v776, 1
        %vm793 = vcmp.eq.s32.totalorder %v777, 1
        %vm794 = vcmp.eq.s32.totalorder %v778, 1
        %v795 = vsel %vm779, 0.0, %v761
        %v796 = vsel %vm780, 0.0, %v760
        %v797 = vsel %vm781, 0.0, %v759
        %v798 = vsel %vm782, 0.0, %v758
        %v799 = vsel %vm783, 0.0, %v757
        %v800 = vsel %vm784, 0.0, %v756
        %v801 = vsel %vm785, 0.0, %v755
        %v802 = vsel %vm786, 0.0, %v754
        %v803 = vsel %vm787, 0.0, %v753
        %v804 = vsel %vm788, 0.0, %v752
        %v805 = vsel %vm789, 0.0, %v751
        %v806 = vsel %vm790, 0.0, %v750
        %v807 = vsel %vm791, 0.0, %v749
        %v808 = vsel %vm792, 0.0, %v748
        %v809 = vsel %vm793, 0.0, %v747
        %v810 = vsel %vm794, 0.0, %v762
        %827 = vrot.lane.b32.xlu0 %v633, 32
        %v828 = vpop.permute.xlu0 %827
        %829 = vrot.lane.b32.xlu0 %v634, 32
        %v830 = vpop.permute.xlu0 %829
        %831 = vrot.lane.b32.xlu0 %v635, 32
        %v832 = vpop.permute.xlu0 %831
        %833 = vrot.lane.b32.xlu0 %v636, 32
        %v834 = vpop.permute.xlu0 %833
        %835 = vrot.lane.b32.xlu0 %v637, 32
        %v836 = vpop.permute.xlu0 %835
        %837 = vrot.lane.b32.xlu0 %v638, 32
        %v838 = vpop.permute.xlu0 %837
        %839 = vrot.lane.b32.xlu0 %v639, 32
        %v840 = vpop.permute.xlu0 %839
        %841 = vrot.lane.b32.xlu0 %v640, 32
        %v842 = vpop.permute.xlu0 %841
        %843 = vrot.lane.b32.xlu0 %v641, 32
        %v844 = vpop.permute.xlu0 %843
        %845 = vrot.lane.b32.xlu0 %v642, 32
        %v846 = vpop.permute.xlu0 %845
        %847 = vrot.lane.b32.xlu0 %v643, 32
        %v848 = vpop.permute.xlu0 %847
        %849 = vrot.lane.b32.xlu0 %v644, 32
        %v850 = vpop.permute.xlu0 %849
        %851 = vrot.lane.b32.xlu0 %v645, 32
        %v852 = vpop.permute.xlu0 %851
        %853 = vrot.lane.b32.xlu0 %v646, 32
        %v854 = vpop.permute.xlu0 %853
        %855 = vrot.lane.b32.xlu0 %v647, 32
        %v856 = vpop.permute.xlu0 %855
        %857 = vrot.lane.b32.xlu0 %v648, 32
        %v858 = vpop.permute.xlu0 %857
        %891 = vrot.lane.b32.xlu0 %v795, 64
        %v892 = vpop.permute.xlu0 %891
        %893 = vrot.lane.b32.xlu0 %v796, 64
        %v894 = vpop.permute.xlu0 %893
        %895 = vrot.lane.b32.xlu0 %v797, 64
        %v896 = vpop.permute.xlu0 %895
        %897 = vrot.lane.b32.xlu0 %v798, 64
        %v898 = vpop.permute.xlu0 %897
        %899 = vrot.lane.b32.xlu0 %v799, 64
        %v900 = vpop.permute.xlu0 %899
        %901 = vrot.lane.b32.xlu0 %v800, 64
        %v902 = vpop.permute.xlu0 %901
        %903 = vrot.lane.b32.xlu0 %v801, 64
        %v904 = vpop.permute.xlu0 %903
        %905 = vrot.lane.b32.xlu0 %v802, 64
        %v906 = vpop.permute.xlu0 %905
        %907 = vrot.lane.b32.xlu0 %v803, 64
        %v908 = vpop.permute.xlu0 %907
        %909 = vrot.lane.b32.xlu0 %v804, 64
        %v910 = vpop.permute.xlu0 %909
        %911 = vrot.lane.b32.xlu0 %v805, 64
        %v912 = vpop.permute.xlu0 %911
        %913 = vrot.lane.b32.xlu0 %v806, 64
        %v914 = vpop.permute.xlu0 %913
        %915 = vrot.lane.b32.xlu0 %v807, 64
        %v916 = vpop.permute.xlu0 %915
        %917 = vrot.lane.b32.xlu0 %v808, 64
        %v918 = vpop.permute.xlu0 %917
        %919 = vrot.lane.b32.xlu0 %v809, 64
        %v920 = vpop.permute.xlu0 %919
        %921 = vrot.lane.b32.xlu0 %v810, 64
        %v922 = vpop.permute.xlu0 %921
        %vm939 = vcmask 261120
        %v940 = vsel %vm939, %v714, %v828
        %v941 = vsel %vm939, %v715, %v830
        %v942 = vsel %vm939, %v716, %v832
        %v943 = vsel %vm939, %v717, %v834
        %v944 = vsel %vm939, %v718, %v836
        %v945 = vsel %vm939, %v719, %v838
        %v946 = vsel %vm939, %v720, %v840
        %v947 = vsel %vm939, %v721, %v842
        %v948 = vsel %vm939, %v722, %v844
        %v949 = vsel %vm939, %v723, %v846
        %v950 = vsel %vm939, %v724, %v848
        %v951 = vsel %vm939, %v725, %v850
        %v952 = vsel %vm939, %v726, %v852
        %v953 = vsel %vm939, %v727, %v854
        %v954 = vsel %vm939, %v728, %v856
        %v955 = vsel %vm939, %v729, %v858
        %vm956 = vcmask 523264
        %v957 = vsel %vm956, %v940, %v892
        %v958 = vsel %vm956, %v941, %v894
        %v959 = vsel %vm956, %v942, %v896
        %v960 = vsel %vm956, %v943, %v898
        %v961 = vsel %vm956, %v944, %v900
        %v962 = vsel %vm956, %v945, %v902
        %v963 = vsel %vm956, %v946, %v904
        %v964 = vsel %vm956, %v947, %v906
        %v965 = vsel %vm956, %v948, %v908
        %v966 = vsel %vm956, %v949, %v910
        %v967 = vsel %vm956, %v950, %v912
        %v968 = vsel %vm956, %v951, %v914
        %v969 = vsel %vm956, %v952, %v916
        %v970 = vsel %vm956, %v953, %v918
        %v971 = vsel %vm956, %v954, %v920
        %v972 = vsel %vm956, %v955, %v922
        %v973 = vld [vmem:[%s1] sm:$0xff]
        %v974 = vld [vmem:[%s1 + $0x8] sm:$0xff]
        %v975 = vld [vmem:[%s1 + $0x10] sm:$0xff]
        %v976 = vld [vmem:[%s1 + $0x18] sm:$0xff]
        %v977 = vld [vmem:[%s1 + $0x20] sm:$0xff]
        %v978 = vld [vmem:[%s1 + $0x28] sm:$0xff]
        %v979 = vld [vmem:[%s1 + $0x30] sm:$0xff]
        %v980 = vld [vmem:[%s1 + $0x38] sm:$0xff]
        %v981 = vld [vmem:[%s1 + $0x40] sm:$0xff]
        %v982 = vld [vmem:[%s1 + $0x48] sm:$0xff]
        %v983 = vld [vmem:[%s1 + $0x50] sm:$0xff]
        %v984 = vld [vmem:[%s1 + $0x58] sm:$0xff]
        %v985 = vld [vmem:[%s2] sm:$0x1]
        %v987 = vlaneseq
        %v988 = vshrl.u32 %v987, 7
        %v989 = vsub.s32 0, %v988
        %v990 = vrot.slane %v985, %v989
        %vm992 = vcmask 785408
        %v994 = vsel %vm992, %v957, 0
        %v997 = vsel %vm992, %v958, 0
        %v1000 = vsel %vm992, %v959, 0
        %v1003 = vsel %vm992, %v960, 0
        %v1006 = vsel %vm992, %v961, 0
        %v1009 = vsel %vm992, %v962, 0
        %v1012 = vsel %vm992, %v963, 0
        %v1015 = vsel %vm992, %v964, 0
        %v1018 = vsel %vm992, %v965, 0
        %v1021 = vsel %vm992, %v966, 0
        %v1024 = vsel %vm992, %v967, 0
        %v1027 = vsel %vm992, %v968, 0
        %v1030 = vsel %vm992, %v969, 0
        %v1033 = vsel %vm992, %v970, 0
        %v1036 = vsel %vm992, %v971, 0
        %v1039 = vsel %vm992, %v972, 0
        %1041 = vmatprep.subr.mxu0 0.0
        %1042 = vmatpush1.msra.mxu0 %v973
        %1043 = vmatprep.subr.mxu0 0.0
        %1044 = vmatpush1.msra.mxu0 %v974
        %1045 = vmatprep.subr.mxu0 0.0
        %1046 = vmatpush1.msra.mxu0 %v975
        %1047 = vmatprep.subr.mxu0 0.0
        %1048 = vmatpush1.msra.mxu0 %v976
        %1049 = vmatprep.subr.mxu0 0.0
        %1050 = vmatpush1.msra.mxu0 %v977
        %1051 = vmatprep.subr.mxu0 0.0
        %1052 = vmatpush1.msra.mxu0 %v978
        %1053 = vmatprep.subr.mxu0 0.0
        %1054 = vmatpush1.msra.mxu0 %v979
        %1055 = vmatprep.subr.mxu0 0.0
        %1056 = vmatpush1.msra.mxu0 %v980
        %1057 = vmatprep.subr.mxu0 0.0
        %1058 = vmatpush1.msra.mxu0 %v981
        %1059 = vmatprep.subr.mxu0 0.0
        %1060 = vmatpush1.msra.mxu0 %v982
        %1061 = vmatprep.subr.mxu0 0.0
        %1062 = vmatpush1.msra.mxu0 %v983
        %1063 = vmatprep.subr.mxu0 0.0
        %1064 = vmatpush1.msra.mxu0 %v984
        %1065 = vmatprep.subr.mxu0 0.0
        %1066 = vmatpush1.msra.mxu0 0.0
        %1067 = vmatprep.subr.mxu0 0.0
        %1068 = vmatpush1.msra.mxu0 0.0
        %1069 = vmatprep.subr.mxu0 0.0
        %1070 = vmatpush1.msra.mxu0 0.0
        %1071 = vmatprep.subr.mxu0 0.0
        %1072 = vmatpush1.msra.mxu0 0.0
        %1073 = vmatprep.subr.mxu0 0.0
        %1074 = vmatpush1.msra.mxu0 0.0
        %1075 = vmatprep.subr.mxu0 0.0
        %1076 = vmatpush1.msra.mxu0 0.0
        %1077 = vmatprep.subr.mxu0 0.0
        %1078 = vmatpush1.msra.mxu0 0.0
        %1079 = vmatprep.subr.mxu0 0.0
        %1080 = vmatpush1.msra.mxu0 0.0
        %1081 = vmatprep.subr.mxu0 0.0
        %1082 = vmatpush1.msra.mxu0 0.0
        %1083 = vmatprep.subr.mxu0 0.0
        %1084 = vmatpush1.msra.mxu0 0.0
        %1085 = vmatprep.subr.mxu0 0.0
        %1086 = vmatpush1.msra.mxu0 0.0
        %1087 = vmatprep.subr.mxu0 0.0
        %1088 = vmatpush1.msra.mxu0 0.0
        %1089 = vmatprep.subr.mxu0 0.0
        %1090 = vmatpush1.msra.mxu0 0.0
        %1091 = vmatprep.subr.mxu0 0.0
        %1092 = vmatpush1.msra.mxu0 0.0
        %1093 = vmatprep.subr.mxu0 0.0
        %1094 = vmatpush1.msra.mxu0 0.0
        %1095 = vmatprep.subr.mxu0 0.0
        %1096 = vmatpush1.msra.mxu0 0.0
        %1097 = vmatprep.subr.mxu0 0.0
        %1098 = vmatpush1.msra.mxu0 0.0
        %1099 = vmatprep.subr.mxu0 0.0
        %1100 = vmatpush1.msra.mxu0 0.0
        %1101 = vmatprep.subr.mxu0 0.0
        %1102 = vmatpush1.msra.mxu0 0.0
        %1103 = vmatprep.subr.mxu0 0.0
        %1104 = vmatpush1.msra.mxu0 0.0
        %1105 = vmatprep.mubr.f32.mxu0 0.0
        %1106 = vmatmul.mubr.f32.gmra.mrb[0].mxu0 %v994
        %v1107 = vpop.f32.mrb[0].mxu0
        %v1108 = vadd.f32 %v990, %v1107
        %v1109 = vpop.f32.mrb[0].mxu0
        %1110 = vmatprep.mubr.f32.mxu0 0.0
        %1111 = vmatmul.mubr.f32.gmra.mrb[0].mxu0 %v997
        %v1112 = vpop.f32.mrb[0].mxu0
        %v1113 = vadd.f32 %v990, %v1112
        %v1114 = vpop.f32.mrb[0].mxu0
        %1115 = vmatprep.mubr.f32.mxu0 0.0
        %1116 = vmatmul.mubr.f32.gmra.mrb[0].mxu0 %v1000
        %v1117 = vpop.f32.mrb[0].mxu0
        %v1118 = vadd.f32 %v990, %v1117
        %v1119 = vpop.f32.mrb[0].mxu0
        %1120 = vmatprep.mubr.f32.mxu0 0.0
        %1121 = vmatmul.mubr.f32.gmra.mrb[0].mxu0 %v1003
        %v1122 = vpop.f32.mrb[0].mxu0
        %v1123 = vadd.f32 %v990, %v1122
        %v1124 = vpop.f32.mrb[0].mxu0
        %1125 = vmatprep.mubr.f32.mxu0 0.0
        %1126 = vmatmul.mubr.f32.gmra.mrb[0].mxu0 %v1006
        %v1127 = vpop.f32.mrb[0].mxu0
        %v1128 = vadd.f32 %v990, %v1127
        %v1129 = vpop.f32.mrb[0].mxu0
        %1130 = vmatprep.mubr.f32.mxu0 0.0
        %1131 = vmatmul.mubr.f32.gmra.mrb[0].mxu0 %v1009
        %v1132 = vpop.f32.mrb[0].mxu0
        %v1133 = vadd.f32 %v990, %v1132
        %v1134 = vpop.f32.mrb[0].mxu0
        %1135 = vmatprep.mubr.f32.mxu0 0.0
        %1136 = vmatmul.mubr.f32.gmra.mrb[0].mxu0 %v1012
        %v1137 = vpop.f32.mrb[0].mxu0
        %v1138 = vadd.f32 %v990, %v1137
        %v1139 = vpop.f32.mrb[0].mxu0
        %1140 = vmatprep.mubr.f32.mxu0 0.0
        %1141 = vmatmul.mubr.f32.gmra.mrb[0].mxu0 %v1015
        %v1142 = vpop.f32.mrb[0].mxu0
        %v1143 = vadd.f32 %v990, %v1142
        %v1144 = vpop.f32.mrb[0].mxu0
        %1145 = vmatprep.mubr.f32.mxu0 0.0
        %1146 = vmatmul.mubr.f32.gmra.mrb[0].mxu0 %v1018
        %v1147 = vpop.f32.mrb[0].mxu0
        %v1148 = vadd.f32 %v990, %v1147
        %v1149 = vpop.f32.mrb[0].mxu0
        %1150 = vmatprep.mubr.f32.mxu0 0.0
        %1151 = vmatmul.mubr.f32.gmra.mrb[0].mxu0 %v1021
        %v1152 = vpop.f32.mrb[0].mxu0
        %v1153 = vadd.f32 %v990, %v1152
        %v1154 = vpop.f32.mrb[0].mxu0
        %1155 = vmatprep.mubr.f32.mxu0 0.0
        %1156 = vmatmul.mubr.f32.gmra.mrb[0].mxu0 %v1024
        %v1157 = vpop.f32.mrb[0].mxu0
        %v1158 = vadd.f32 %v990, %v1157
        %v1159 = vpop.f32.mrb[0].mxu0
        %1160 = vmatprep.mubr.f32.mxu0 0.0
        %1161 = vmatmul.mubr.f32.gmra.mrb[0].mxu0 %v1027
        %v1162 = vpop.f32.mrb[0].mxu0
        %v1163 = vadd.f32 %v990, %v1162
        %v1164 = vpop.f32.mrb[0].mxu0
        %1165 = vmatprep.mubr.f32.mxu0 0.0
        %1166 = vmatmul.mubr.f32.gmra.mrb[0].mxu0 %v1030
        %v1167 = vpop.f32.mrb[0].mxu0
        %v1168 = vadd.f32 %v990, %v1167
        %v1169 = vpop.f32.mrb[0].mxu0
        %1170 = vmatprep.mubr.f32.mxu0 0.0
        %1171 = vmatmul.mubr.f32.gmra.mrb[0].mxu0 %v1033
        %v1172 = vpop.f32.mrb[0].mxu0
        %v1173 = vadd.f32 %v990, %v1172
        %v1174 = vpop.f32.mrb[0].mxu0
        %1175 = vmatprep.mubr.f32.mxu0 0.0
        %1176 = vmatmul.mubr.f32.gmra.mrb[0].mxu0 %v1036
        %v1177 = vpop.f32.mrb[0].mxu0
        %v1178 = vadd.f32 %v990, %v1177
        %v1179 = vpop.f32.mrb[0].mxu0
        %1180 = vmatprep.mubr.f32.mxu0 0.0
        %1181 = vmatmul.mubr.f32.gmra.mrb[0].mxu0 %v1039
        %v1182 = vpop.f32.mrb[0].mxu0
        %v1183 = vadd.f32 %v990, %v1182
        %v1184 = vpop.f32.mrb[0].mxu0
        %1185 = vdwg.mxu0
        %v1186 = vsel %vm939, %v1108, 0.0
        %1187 = vadd.xlane.f32.xlu0 %v1186
        %v1188 = vpop.xlane.xlu0 %1187
        %v1189 = vsel %vm939, %v1113, 0.0
        %1190 = vadd.xlane.f32.xlu0 %v1189
        %v1191 = vpop.xlane.xlu0 %1190
        %v1192 = vsel %vm939, %v1118, 0.0
        %1193 = vadd.xlane.f32.xlu0 %v1192
        %v1194 = vpop.xlane.xlu0 %1193
        %v1195 = vsel %vm939, %v1123, 0.0
        %1196 = vadd.xlane.f32.xlu0 %v1195
        %v1197 = vpop.xlane.xlu0 %1196
        %v1198 = vsel %vm939, %v1128, 0.0
        %1199 = vadd.xlane.f32.xlu0 %v1198
        %v1200 = vpop.xlane.xlu0 %1199
        %v1201 = vsel %vm939, %v1133, 0.0
        %1202 = vadd.xlane.f32.xlu0 %v1201
        %v1203 = vpop.xlane.xlu0 %1202
        %v1204 = vsel %vm939, %v1138, 0.0
        %1205 = vadd.xlane.f32.xlu0 %v1204
        %v1206 = vpop.xlane.xlu0 %1205
        %v1207 = vsel %vm939, %v1143, 0.0
        %1208 = vadd.xlane.f32.xlu0 %v1207
        %v1209 = vpop.xlane.xlu0 %1208
        %v1210 = vsel %vm939, %v1148, 0.0
        %1211 = vadd.xlane.f32.xlu0 %v1210
        %v1212 = vpop.xlane.xlu0 %1211
        %v1213 = vsel %vm939, %v1153, 0.0
        %1214 = vadd.xlane.f32.xlu0 %v1213
        %v1215 = vpop.xlane.xlu0 %1214
        %v1216 = vsel %vm939, %v1158, 0.0
        %1217 = vadd.xlane.f32.xlu0 %v1216
        %v1218 = vpop.xlane.xlu0 %1217
        %v1219 = vsel %vm939, %v1163, 0.0
        %1220 = vadd.xlane.f32.xlu0 %v1219
        %v1221 = vpop.xlane.xlu0 %1220
        %v1222 = vsel %vm939, %v1168, 0.0
        %1223 = vadd.xlane.f32.xlu0 %v1222
        %v1224 = vpop.xlane.xlu0 %1223
        %v1225 = vsel %vm939, %v1173, 0.0
        %1226 = vadd.xlane.f32.xlu0 %v1225
        %v1227 = vpop.xlane.xlu0 %1226
        %v1228 = vsel %vm939, %v1178, 0.0
        %1229 = vadd.xlane.f32.xlu0 %v1228
        %v1230 = vpop.xlane.xlu0 %1229
        %v1231 = vsel %vm939, %v1183, 0.0
        %1232 = vadd.xlane.f32.xlu0 %v1231
        %v1233 = vpop.xlane.xlu0 %1232
        %v1234 = vrcp.pop 32.0
        %v1235 = vmul.f32 %v1188, %v1234
        %v1236 = vmul.f32 %v1191, %v1234
        %v1237 = vmul.f32 %v1194, %v1234
        %v1238 = vmul.f32 %v1197, %v1234
        %v1239 = vmul.f32 %v1200, %v1234
        %v1240 = vmul.f32 %v1203, %v1234
        %v1241 = vmul.f32 %v1206, %v1234
        %v1242 = vmul.f32 %v1209, %v1234
        %v1243 = vmul.f32 %v1212, %v1234
        %v1244 = vmul.f32 %v1215, %v1234
        %v1245 = vmul.f32 %v1218, %v1234
        %v1246 = vmul.f32 %v1221, %v1234
        %v1247 = vmul.f32 %v1224, %v1234
        %v1248 = vmul.f32 %v1227, %v1234
        %v1249 = vmul.f32 %v1230, %v1234
        %v1250 = vmul.f32 %v1233, %v1234
        %v1251 = vsub.f32 %v1108, %v1235
        %v1252 = vsub.f32 %v1113, %v1236
        %v1253 = vsub.f32 %v1118, %v1237
        %v1254 = vsub.f32 %v1123, %v1238
        %v1255 = vsub.f32 %v1128, %v1239
        %v1256 = vsub.f32 %v1133, %v1240
        %v1257 = vsub.f32 %v1138, %v1241
        %v1258 = vsub.f32 %v1143, %v1242
        %v1259 = vsub.f32 %v1148, %v1243
        %v1260 = vsub.f32 %v1153, %v1244
        %v1261 = vsub.f32 %v1158, %v1245
        %v1262 = vsub.f32 %v1163, %v1246
        %v1263 = vsub.f32 %v1168, %v1247
        %v1264 = vsub.f32 %v1173, %v1248
        %v1265 = vsub.f32 %v1178, %v1249
        %v1266 = vsub.f32 %v1183, %v1250
        %v1267 = vmul.f32 %v1251, %v1251
        %v1268 = vmul.f32 %v1252, %v1252
        %v1269 = vmul.f32 %v1253, %v1253
        %v1270 = vmul.f32 %v1254, %v1254
        %v1271 = vmul.f32 %v1255, %v1255
        %v1272 = vmul.f32 %v1256, %v1256
        %v1273 = vmul.f32 %v1257, %v1257
        %v1274 = vmul.f32 %v1258, %v1258
        %v1275 = vmul.f32 %v1259, %v1259
        %v1276 = vmul.f32 %v1260, %v1260
        %v1277 = vmul.f32 %v1261, %v1261
        %v1278 = vmul.f32 %v1262, %v1262
        %v1279 = vmul.f32 %v1263, %v1263
        %v1280 = vmul.f32 %v1264, %v1264
        %v1281 = vmul.f32 %v1265, %v1265
        %v1282 = vmul.f32 %v1266, %v1266
        %v1283 = vsel %vm939, %v1267, 0.0
        %1284 = vadd.xlane.f32.xlu0 %v1283
        %v1285 = vpop.xlane.xlu0 %1284
        %v1286 = vsel %vm939, %v1268, 0.0
        %1287 = vadd.xlane.f32.xlu0 %v1286
        %v1288 = vpop.xlane.xlu0 %1287
        %v1289 = vsel %vm939, %v1269, 0.0
        %1290 = vadd.xlane.f32.xlu0 %v1289
        %v1291 = vpop.xlane.xlu0 %1290
        %v1292 = vsel %vm939, %v1270, 0.0
        %1293 = vadd.xlane.f32.xlu0 %v1292
        %v1294 = vpop.xlane.xlu0 %1293
        %v1295 = vsel %vm939, %v1271, 0.0
        %1296 = vadd.xlane.f32.xlu0 %v1295
        %v1297 = vpop.xlane.xlu0 %1296
        %v1298 = vsel %vm939, %v1272, 0.0
        %1299 = vadd.xlane.f32.xlu0 %v1298
        %v1300 = vpop.xlane.xlu0 %1299
        %v1301 = vsel %vm939, %v1273, 0.0
        %1302 = vadd.xlane.f32.xlu0 %v1301
        %v1303 = vpop.xlane.xlu0 %1302
        %v1304 = vsel %vm939, %v1274, 0.0
        %1305 = vadd.xlane.f32.xlu0 %v1304
        %v1306 = vpop.xlane.xlu0 %1305
        %v1307 = vsel %vm939, %v1275, 0.0
        %1308 = vadd.xlane.f32.xlu0 %v1307
        %v1309 = vpop.xlane.xlu0 %1308
        %v1310 = vsel %vm939, %v1276, 0.0
        %1311 = vadd.xlane.f32.xlu0 %v1310
        %v1312 = vpop.xlane.xlu0 %1311
        %v1313 = vsel %vm939, %v1277, 0.0
        %1314 = vadd.xlane.f32.xlu0 %v1313
        %v1315 = vpop.xlane.xlu0 %1314
        %v1316 = vsel %vm939, %v1278, 0.0
        %1317 = vadd.xlane.f32.xlu0 %v1316
        %v1318 = vpop.xlane.xlu0 %1317
        %v1319 = vsel %vm939, %v1279, 0.0
        %1320 = vadd.xlane.f32.xlu0 %v1319
        %v1321 = vpop.xlane.xlu0 %1320
        %v1322 = vsel %vm939, %v1280, 0.0
        %1323 = vadd.xlane.f32.xlu0 %v1322
        %v1324 = vpop.xlane.xlu0 %1323
        %v1325 = vsel %vm939, %v1281, 0.0
        %1326 = vadd.xlane.f32.xlu0 %v1325
        %v1327 = vpop.xlane.xlu0 %1326
        %v1328 = vsel %vm939, %v1282, 0.0
        %1329 = vadd.xlane.f32.xlu0 %v1328
        %v1330 = vpop.xlane.xlu0 %1329
        %v1331 = vmul.f32 %v1285, %v1234
        %v1332 = vmul.f32 %v1288, %v1234
        %v1333 = vmul.f32 %v1291, %v1234
        %v1334 = vmul.f32 %v1294, %v1234
        %v1335 = vmul.f32 %v1297, %v1234
        %v1336 = vmul.f32 %v1300, %v1234
        %v1337 = vmul.f32 %v1303, %v1234
        %v1338 = vmul.f32 %v1306, %v1234
        %v1339 = vmul.f32 %v1309, %v1234
        %v1340 = vmul.f32 %v1312, %v1234
        %v1341 = vmul.f32 %v1315, %v1234
        %v1342 = vmul.f32 %v1318, %v1234
        %v1343 = vmul.f32 %v1321, %v1234
        %v1344 = vmul.f32 %v1324, %v1234
        %v1345 = vmul.f32 %v1327, %v1234
        %v1346 = vmul.f32 %v1330, %v1234
        %v1347 = vadd.f32 %v1331, 1e-05
        %v1348 = vadd.f32 %v1332, 1e-05
        %v1349 = vadd.f32 %v1333, 1e-05
        %v1350 = vadd.f32 %v1334, 1e-05
        %v1351 = vadd.f32 %v1335, 1e-05
        %v1352 = vadd.f32 %v1336, 1e-05
        %v1353 = vadd.f32 %v1337, 1e-05
        %v1354 = vadd.f32 %v1338, 1e-05
        %v1355 = vadd.f32 %v1339, 1e-05
        %v1356 = vadd.f32 %v1340, 1e-05
        %v1357 = vadd.f32 %v1341, 1e-05
        %v1358 = vadd.f32 %v1342, 1e-05
        %v1359 = vadd.f32 %v1343, 1e-05
        %v1360 = vadd.f32 %v1344, 1e-05
        %v1361 = vadd.f32 %v1345, 1e-05
        %v1362 = vadd.f32 %v1346, 1e-05
        %v1363 = vrsqrt.pop %v1347
        %v1364 = vrsqrt.pop %v1348
        %v1365 = vrsqrt.pop %v1349
        %v1366 = vrsqrt.pop %v1350
        %v1367 = vrsqrt.pop %v1351
        %v1368 = vrsqrt.pop %v1352
        %v1369 = vrsqrt.pop %v1353
        %v1370 = vrsqrt.pop %v1354
        %v1371 = vrsqrt.pop %v1355
        %v1372 = vrsqrt.pop %v1356
        %v1373 = vrsqrt.pop %v1357
        %v1374 = vrsqrt.pop %v1358
        %v1375 = vrsqrt.pop %v1359
        %v1376 = vrsqrt.pop %v1360
        %v1377 = vrsqrt.pop %v1361
        %v1378 = vrsqrt.pop %v1362
        %v1379 = vmul.f32 %v1251, %v1363
        %v1380 = vmul.f32 %v1252, %v1364
        %v1381 = vmul.f32 %v1253, %v1365
        %v1382 = vmul.f32 %v1254, %v1366
        %v1383 = vmul.f32 %v1255, %v1367
        %v1384 = vmul.f32 %v1256, %v1368
        %v1385 = vmul.f32 %v1257, %v1369
        %v1386 = vmul.f32 %v1258, %v1370
        %v1387 = vmul.f32 %v1259, %v1371
        %v1388 = vmul.f32 %v1260, %v1372
        %v1389 = vmul.f32 %v1261, %v1373
        %v1390 = vmul.f32 %v1262, %v1374
        %v1391 = vmul.f32 %v1263, %v1375
        %v1392 = vmul.f32 %v1264, %v1376
        %v1393 = vmul.f32 %v1265, %v1377
        %v1394 = vmul.f32 %v1266, %v1378
        %v1395 = vld [vmem:[%s3] sm:$0x1]
        %v1397 = vlaneseq
        %v1398 = vshrl.u32 %v1397, 7
        %v1399 = vsub.s32 0, %v1398
        %v1400 = vrot.slane %v1395, %v1399
        %v1402 = vmul.f32 %v1379, %v1400
        %v1403 = vmul.f32 %v1380, %v1400
        %v1404 = vmul.f32 %v1381, %v1400
        %v1405 = vmul.f32 %v1382, %v1400
        %v1406 = vmul.f32 %v1383, %v1400
        %v1407 = vmul.f32 %v1384, %v1400
        %v1408 = vmul.f32 %v1385, %v1400
        %v1409 = vmul.f32 %v1386, %v1400
        %v1410 = vmul.f32 %v1387, %v1400
        %v1411 = vmul.f32 %v1388, %v1400
        %v1412 = vmul.f32 %v1389, %v1400
        %v1413 = vmul.f32 %v1390, %v1400
        %v1414 = vmul.f32 %v1391, %v1400
        %v1415 = vmul.f32 %v1392, %v1400
        %v1416 = vmul.f32 %v1393, %v1400
        %v1417 = vmul.f32 %v1394, %v1400
        %v1418 = vld [vmem:[%s4] sm:$0x1]
        %v1420 = vlaneseq
        %v1421 = vshrl.u32 %v1420, 7
        %v1422 = vsub.s32 0, %v1421
        %v1423 = vrot.slane %v1418, %v1422
        %v1425 = vadd.f32 %v1402, %v1423
        %v1426 = vadd.f32 %v1403, %v1423
        %v1427 = vadd.f32 %v1404, %v1423
        %v1428 = vadd.f32 %v1405, %v1423
        %v1429 = vadd.f32 %v1406, %v1423
        %v1430 = vadd.f32 %v1407, %v1423
        %v1431 = vadd.f32 %v1408, %v1423
        %v1432 = vadd.f32 %v1409, %v1423
        %v1433 = vadd.f32 %v1410, %v1423
        %v1434 = vadd.f32 %v1411, %v1423
        %v1435 = vadd.f32 %v1412, %v1423
        %v1436 = vadd.f32 %v1413, %v1423
        %v1437 = vadd.f32 %v1414, %v1423
        %v1438 = vadd.f32 %v1415, %v1423
        %v1439 = vadd.f32 %v1416, %v1423
        %v1440 = vadd.f32 %v1417, %v1423
        %v1441 = vmax.f32 %v1425, 0.0
        %v1442 = vmax.f32 %v1426, 0.0
        %v1443 = vmax.f32 %v1427, 0.0
        %v1444 = vmax.f32 %v1428, 0.0
        %v1445 = vmax.f32 %v1429, 0.0
        %v1446 = vmax.f32 %v1430, 0.0
        %v1447 = vmax.f32 %v1431, 0.0
        %v1448 = vmax.f32 %v1432, 0.0
        %v1449 = vmax.f32 %v1433, 0.0
        %v1450 = vmax.f32 %v1434, 0.0
        %v1451 = vmax.f32 %v1435, 0.0
        %v1452 = vmax.f32 %v1436, 0.0
        %v1453 = vmax.f32 %v1437, 0.0
        %v1454 = vmax.f32 %v1438, 0.0
        %v1455 = vmax.f32 %v1439, 0.0
        %v1456 = vmax.f32 %v1440, 0.0
        %v1457 = vrot.slane %v1441, 7
        %v1458 = vrot.slane %v1442, 7
        %v1459 = vrot.slane %v1443, 7
        %v1460 = vrot.slane %v1444, 7
        %v1461 = vrot.slane %v1445, 7
        %v1462 = vrot.slane %v1446, 7
        %v1463 = vrot.slane %v1447, 7
        %v1464 = vrot.slane %v1448, 7
        %v1465 = vrot.slane %v1449, 7
        %v1466 = vrot.slane %v1450, 7
        %v1467 = vrot.slane %v1451, 7
        %v1468 = vrot.slane %v1452, 7
        %v1469 = vrot.slane %v1453, 7
        %v1470 = vrot.slane %v1454, 7
        %v1471 = vrot.slane %v1455, 7
        %v1472 = vrot.slane %v1456, 7
        %v1473 = vsel %vm665, %v1471, %v1472
        %v1474 = vsel %vm665, %v1470, %v1471
        %v1475 = vsel %vm665, %v1469, %v1470
        %v1476 = vsel %vm665, %v1468, %v1469
        %v1477 = vsel %vm665, %v1467, %v1468
        %v1478 = vsel %vm665, %v1466, %v1467
        %v1479 = vsel %vm665, %v1465, %v1466
        %v1480 = vsel %vm665, %v1464, %v1465
        %v1481 = vsel %vm665, %v1463, %v1464
        %v1482 = vsel %vm665, %v1462, %v1463
        %v1483 = vsel %vm665, %v1461, %v1462
        %v1484 = vsel %vm665, %v1460, %v1461
        %v1485 = vsel %vm665, %v1459, %v1460
        %v1486 = vsel %vm665, %v1458, %v1459
        %v1487 = vsel %vm665, %v1457, %v1458
        %v1488 = vsel %vm665, %v1472, %v1457
        %v1489 = vsel %vm698, 0.0, %v1488
        %v1490 = vsel %vm699, 0.0, %v1487
        %v1491 = vsel %vm700, 0.0, %v1486
        %v1492 = vsel %vm701, 0.0, %v1485
        %v1493 = vsel %vm702, 0.0, %v1484
        %v1494 = vsel %vm703, 0.0, %v1483
        %v1495 = vsel %vm704, 0.0, %v1482
        %v1496 = vsel %vm705, 0.0, %v1481
        %v1497 = vsel %vm706, 0.0, %v1480
        %v1498 = vsel %vm707, 0.0, %v1479
        %v1499 = vsel %vm708, 0.0, %v1478
        %v1500 = vsel %vm709, 0.0, %v1477
        %v1501 = vsel %vm710, 0.0, %v1476
        %v1502 = vsel %vm711, 0.0, %v1475
        %v1503 = vsel %vm712, 0.0, %v1474
        %v1504 = vsel %vm713, 0.0, %v1473
        %v1505 = vrot.slane %v1441, 1
        %v1506 = vrot.slane %v1442, 1
        %v1507 = vrot.slane %v1443, 1
        %v1508 = vrot.slane %v1444, 1
        %v1509 = vrot.slane %v1445, 1
        %v1510 = vrot.slane %v1446, 1
        %v1511 = vrot.slane %v1447, 1
        %v1512 = vrot.slane %v1448, 1
        %v1513 = vrot.slane %v1449, 1
        %v1514 = vrot.slane %v1450, 1
        %v1515 = vrot.slane %v1451, 1
        %v1516 = vrot.slane %v1452, 1
        %v1517 = vrot.slane %v1453, 1
        %v1518 = vrot.slane %v1454, 1
        %v1519 = vrot.slane %v1455, 1
        %v1520 = vrot.slane %v1456, 1
        %v1521 = vsel %vm746, %v1519, %v1520
        %v1522 = vsel %vm746, %v1518, %v1519
        %v1523 = vsel %vm746, %v1517, %v1518
        %v1524 = vsel %vm746, %v1516, %v1517
        %v1525 = vsel %vm746, %v1515, %v1516
        %v1526 = vsel %vm746, %v1514, %v1515
        %v1527 = vsel %vm746, %v1513, %v1514
        %v1528 = vsel %vm746, %v1512, %v1513
        %v1529 = vsel %vm746, %v1511, %v1512
        %v1530 = vsel %vm746, %v1510, %v1511
        %v1531 = vsel %vm746, %v1509, %v1510
        %v1532 = vsel %vm746, %v1508, %v1509
        %v1533 = vsel %vm746, %v1507, %v1508
        %v1534 = vsel %vm746, %v1506, %v1507
        %v1535 = vsel %vm746, %v1505, %v1506
        %v1536 = vsel %vm746, %v1520, %v1505
        %v1537 = vsel %vm779, 0.0, %v1535
        %v1538 = vsel %vm780, 0.0, %v1534
        %v1539 = vsel %vm781, 0.0, %v1533
        %v1540 = vsel %vm782, 0.0, %v1532
        %v1541 = vsel %vm783, 0.0, %v1531
        %v1542 = vsel %vm784, 0.0, %v1530
        %v1543 = vsel %vm785, 0.0, %v1529
        %v1544 = vsel %vm786, 0.0, %v1528
        %v1545 = vsel %vm787, 0.0, %v1527
        %v1546 = vsel %vm788, 0.0, %v1526
        %v1547 = vsel %vm789, 0.0, %v1525
        %v1548 = vsel %vm790, 0.0, %v1524
        %v1549 = vsel %vm791, 0.0, %v1523
        %v1550 = vsel %vm792, 0.0, %v1522
        %v1551 = vsel %vm793, 0.0, %v1521
        %v1552 = vsel %vm794, 0.0, %v1536
        %1569 = vrot.lane.b32.xlu0 %v1441, 32
        %v1570 = vpop.permute.xlu0 %1569
        %1571 = vrot.lane.b32.xlu0 %v1442, 32
        %v1572 = vpop.permute.xlu0 %1571
        %1573 = vrot.lane.b32.xlu0 %v1443, 32
        %v1574 = vpop.permute.xlu0 %1573
        %1575 = vrot.lane.b32.xlu0 %v1444, 32
        %v1576 = vpop.permute.xlu0 %1575
        %1577 = vrot.lane.b32.xlu0 %v1445, 32
        %v1578 = vpop.permute.xlu0 %1577
        %1579 = vrot.lane.b32.xlu0 %v1446, 32
        %v1580 = vpop.permute.xlu0 %1579
        %1581 = vrot.lane.b32.xlu0 %v1447, 32
        %v1582 = vpop.permute.xlu0 %1581
        %1583 = vrot.lane.b32.xlu0 %v1448, 32
        %v1584 = vpop.permute.xlu0 %1583
        %1585 = vrot.lane.b32.xlu0 %v1449, 32
        %v1586 = vpop.permute.xlu0 %1585
        %1587 = vrot.lane.b32.xlu0 %v1450, 32
        %v1588 = vpop.permute.xlu0 %1587
        %1589 = vrot.lane.b32.xlu0 %v1451, 32
        %v1590 = vpop.permute.xlu0 %1589
        %1591 = vrot.lane.b32.xlu0 %v1452, 32
        %v1592 = vpop.permute.xlu0 %1591
        %1593 = vrot.lane.b32.xlu0 %v1453, 32
        %v1594 = vpop.permute.xlu0 %1593
        %1595 = vrot.lane.b32.xlu0 %v1454, 32
        %v1596 = vpop.permute.xlu0 %1595
        %1597 = vrot.lane.b32.xlu0 %v1455, 32
        %v1598 = vpop.permute.xlu0 %1597
        %1599 = vrot.lane.b32.xlu0 %v1456, 32
        %v1600 = vpop.permute.xlu0 %1599
        %1633 = vrot.lane.b32.xlu0 %v1537, 64
        %v1634 = vpop.permute.xlu0 %1633
        %1635 = vrot.lane.b32.xlu0 %v1538, 64
        %v1636 = vpop.permute.xlu0 %1635
        %1637 = vrot.lane.b32.xlu0 %v1539, 64
        %v1638 = vpop.permute.xlu0 %1637
        %1639 = vrot.lane.b32.xlu0 %v1540, 64
        %v1640 = vpop.permute.xlu0 %1639
        %1641 = vrot.lane.b32.xlu0 %v1541, 64
        %v1642 = vpop.permute.xlu0 %1641
        %1643 = vrot.lane.b32.xlu0 %v1542, 64
        %v1644 = vpop.permute.xlu0 %1643
        %1645 = vrot.lane.b32.xlu0 %v1543, 64
        %v1646 = vpop.permute.xlu0 %1645
        %1647 = vrot.lane.b32.xlu0 %v1544, 64
        %v1648 = vpop.permute.xlu0 %1647
        %1649 = vrot.lane.b32.xlu0 %v1545, 64
        %v1650 = vpop.permute.xlu0 %1649
        %1651 = vrot.lane.b32.xlu0 %v1546, 64
        %v1652 = vpop.permute.xlu0 %1651
        %1653 = vrot.lane.b32.xlu0 %v1547, 64
        %v1654 = vpop.permute.xlu0 %1653
        %1655 = vrot.lane.b32.xlu0 %v1548, 64
        %v1656 = vpop.permute.xlu0 %1655
        %1657 = vrot.lane.b32.xlu0 %v1549, 64
        %v1658 = vpop.permute.xlu0 %1657
        %1659 = vrot.lane.b32.xlu0 %v1550, 64
        %v1660 = vpop.permute.xlu0 %1659
        %1661 = vrot.lane.b32.xlu0 %v1551, 64
        %v1662 = vpop.permute.xlu0 %1661
        %1663 = vrot.lane.b32.xlu0 %v1552, 64
        %v1664 = vpop.permute.xlu0 %1663
        %v1681 = vsel %vm939, %v1489, %v1570
        %v1682 = vsel %vm939, %v1490, %v1572
        %v1683 = vsel %vm939, %v1491, %v1574
        %v1684 = vsel %vm939, %v1492, %v1576
        %v1685 = vsel %vm939, %v1493, %v1578
        %v1686 = vsel %vm939, %v1494, %v1580
        %v1687 = vsel %vm939, %v1495, %v1582
        %v1688 = vsel %vm939, %v1496, %v1584
        %v1689 = vsel %vm939, %v1497, %v1586
        %v1690 = vsel %vm939, %v1498, %v1588
        %v1691 = vsel %vm939, %v1499, %v1590
        %v1692 = vsel %vm939, %v1500, %v1592
        %v1693 = vsel %vm939, %v1501, %v1594
        %v1694 = vsel %vm939, %v1502, %v1596
        %v1695 = vsel %vm939, %v1503, %v1598
        %v1696 = vsel %vm939, %v1504, %v1600
        %v1697 = vsel %vm956, %v1681, %v1634
        %v1698 = vsel %vm956, %v1682, %v1636
        %v1699 = vsel %vm956, %v1683, %v1638
        %v1700 = vsel %vm956, %v1684, %v1640
        %v1701 = vsel %vm956, %v1685, %v1642
        %v1702 = vsel %vm956, %v1686, %v1644
        %v1703 = vsel %vm956, %v1687, %v1646
        %v1704 = vsel %vm956, %v1688, %v1648
        %v1705 = vsel %vm956, %v1689, %v1650
        %v1706 = vsel %vm956, %v1690, %v1652
        %v1707 = vsel %vm956, %v1691, %v1654
        %v1708 = vsel %vm956, %v1692, %v1656
        %v1709 = vsel %vm956, %v1693, %v1658
        %v1710 = vsel %vm956, %v1694, %v1660
        %v1711 = vsel %vm956, %v1695, %v1662
        %v1712 = vsel %vm956, %v1696, %v1664
        %v1713 = vld [vmem:[%s5] sm:$0xff]
        %v1714 = vld [vmem:[%s5 + $0x8] sm:$0xff]
        %v1715 = vld [vmem:[%s5 + $0x10] sm:$0xff]
        %v1716 = vld [vmem:[%s5 + $0x18] sm:$0xff]
        %v1717 = vld [vmem:[%s5 + $0x20] sm:$0xff]
        %v1718 = vld [vmem:[%s5 + $0x28] sm:$0xff]
        %v1719 = vld [vmem:[%s5 + $0x30] sm:$0xff]
        %v1720 = vld [vmem:[%s5 + $0x38] sm:$0xff]
        %v1721 = vld [vmem:[%s5 + $0x40] sm:$0xff]
        %v1722 = vld [vmem:[%s5 + $0x48] sm:$0xff]
        %v1723 = vld [vmem:[%s5 + $0x50] sm:$0xff]
        %v1724 = vld [vmem:[%s5 + $0x58] sm:$0xff]
        %v1725 = vld [vmem:[%s6] sm:$0x1]
        %v1727 = vlaneseq
        %v1728 = vshrl.u32 %v1727, 7
        %v1729 = vsub.s32 0, %v1728
        %v1730 = vrot.slane %v1725, %v1729
        %v1733 = vsel %vm992, %v1697, 0
        %v1736 = vsel %vm992, %v1698, 0
        %v1739 = vsel %vm992, %v1699, 0
        %v1742 = vsel %vm992, %v1700, 0
        %v1745 = vsel %vm992, %v1701, 0
        %v1748 = vsel %vm992, %v1702, 0
        %v1751 = vsel %vm992, %v1703, 0
        %v1754 = vsel %vm992, %v1704, 0
        %v1757 = vsel %vm992, %v1705, 0
        %v1760 = vsel %vm992, %v1706, 0
        %v1763 = vsel %vm992, %v1707, 0
        %v1766 = vsel %vm992, %v1708, 0
        %v1769 = vsel %vm992, %v1709, 0
        %v1772 = vsel %vm992, %v1710, 0
        %v1775 = vsel %vm992, %v1711, 0
        %v1778 = vsel %vm992, %v1712, 0
        %1780 = vmatprep.subr.mxu0 0.0
        %1781 = vmatpush1.msra.mxu0 %v1713
        %1782 = vmatprep.subr.mxu0 0.0
        %1783 = vmatpush1.msra.mxu0 %v1714
        %1784 = vmatprep.subr.mxu0 0.0
        %1785 = vmatpush1.msra.mxu0 %v1715
        %1786 = vmatprep.subr.mxu0 0.0
        %1787 = vmatpush1.msra.mxu0 %v1716
        %1788 = vmatprep.subr.mxu0 0.0
        %1789 = vmatpush1.msra.mxu0 %v1717
        %1790 = vmatprep.subr.mxu0 0.0
        %1791 = vmatpush1.msra.mxu0 %v1718
        %1792 = vmatprep.subr.mxu0 0.0
        %1793 = vmatpush1.msra.mxu0 %v1719
        %1794 = vmatprep.subr.mxu0 0.0
        %1795 = vmatpush1.msra.mxu0 %v1720
        %1796 = vmatprep.subr.mxu0 0.0
        %1797 = vmatpush1.msra.mxu0 %v1721
        %1798 = vmatprep.subr.mxu0 0.0
        %1799 = vmatpush1.msra.mxu0 %v1722
        %1800 = vmatprep.subr.mxu0 0.0
        %1801 = vmatpush1.msra.mxu0 %v1723
        %1802 = vmatprep.subr.mxu0 0.0
        %1803 = vmatpush1.msra.mxu0 %v1724
        %1804 = vmatprep.subr.mxu0 0.0
        %1805 = vmatpush1.msra.mxu0 0.0
        %1806 = vmatprep.subr.mxu0 0.0
        %1807 = vmatpush1.msra.mxu0 0.0
        %1808 = vmatprep.subr.mxu0 0.0
        %1809 = vmatpush1.msra.mxu0 0.0
        %1810 = vmatprep.subr.mxu0 0.0
        %1811 = vmatpush1.msra.mxu0 0.0
        %1812 = vmatprep.subr.mxu0 0.0
        %1813 = vmatpush1.msra.mxu0 0.0
        %1814 = vmatprep.subr.mxu0 0.0
        %1815 = vmatpush1.msra.mxu0 0.0
        %1816 = vmatprep.subr.mxu0 0.0
        %1817 = vmatpush1.msra.mxu0 0.0
        %1818 = vmatprep.subr.mxu0 0.0
        %1819 = vmatpush1.msra.mxu0 0.0
        %1820 = vmatprep.subr.mxu0 0.0
        %1821 = vmatpush1.msra.mxu0 0.0
        %1822 = vmatprep.subr.mxu0 0.0
        %1823 = vmatpush1.msra.mxu0 0.0
        %1824 = vmatprep.subr.mxu0 0.0
        %1825 = vmatpush1.msra.mxu0 0.0
        %1826 = vmatprep.subr.mxu0 0.0
        %1827 = vmatpush1.msra.mxu0 0.0
        %1828 = vmatprep.subr.mxu0 0.0
        %1829 = vmatpush1.msra.mxu0 0.0
        %1830 = vmatprep.subr.mxu0 0.0
        %1831 = vmatpush1.msra.mxu0 0.0
        %1832 = vmatprep.subr.mxu0 0.0
        %1833 = vmatpush1.msra.mxu0 0.0
        %1834 = vmatprep.subr.mxu0 0.0
        %1835 = vmatpush1.msra.mxu0 0.0
        %1836 = vmatprep.subr.mxu0 0.0
        %1837 = vmatpush1.msra.mxu0 0.0
        %1838 = vmatprep.subr.mxu0 0.0
        %1839 = vmatpush1.msra.mxu0 0.0
        %1840 = vmatprep.subr.mxu0 0.0
        %1841 = vmatpush1.msra.mxu0 0.0
        %1842 = vmatprep.subr.mxu0 0.0
        %1843 = vmatpush1.msra.mxu0 0.0
        %1844 = vmatprep.mubr.f32.mxu0 0.0
        %1845 = vmatmul.mubr.f32.gmra.mrb[0].mxu0 %v1733
        %v1846 = vpop.f32.mrb[0].mxu0
        %v1847 = vadd.f32 %v1730, %v1846
        %v1848 = vpop.f32.mrb[0].mxu0
        %1849 = vmatprep.mubr.f32.mxu0 0.0
        %1850 = vmatmul.mubr.f32.gmra.mrb[0].mxu0 %v1736
        %v1851 = vpop.f32.mrb[0].mxu0
        %v1852 = vadd.f32 %v1730, %v1851
        %v1853 = vpop.f32.mrb[0].mxu0
        %1854 = vmatprep.mubr.f32.mxu0 0.0
        %1855 = vmatmul.mubr.f32.gmra.mrb[0].mxu0 %v1739
        %v1856 = vpop.f32.mrb[0].mxu0
        %v1857 = vadd.f32 %v1730, %v1856
        %v1858 = vpop.f32.mrb[0].mxu0
        %1859 = vmatprep.mubr.f32.mxu0 0.0
        %1860 = vmatmul.mubr.f32.gmra.mrb[0].mxu0 %v1742
        %v1861 = vpop.f32.mrb[0].mxu0
        %v1862 = vadd.f32 %v1730, %v1861
        %v1863 = vpop.f32.mrb[0].mxu0
        %1864 = vmatprep.mubr.f32.mxu0 0.0
        %1865 = vmatmul.mubr.f32.gmra.mrb[0].mxu0 %v1745
        %v1866 = vpop.f32.mrb[0].mxu0
        %v1867 = vadd.f32 %v1730, %v1866
        %v1868 = vpop.f32.mrb[0].mxu0
        %1869 = vmatprep.mubr.f32.mxu0 0.0
        %1870 = vmatmul.mubr.f32.gmra.mrb[0].mxu0 %v1748
        %v1871 = vpop.f32.mrb[0].mxu0
        %v1872 = vadd.f32 %v1730, %v1871
        %v1873 = vpop.f32.mrb[0].mxu0
        %1874 = vmatprep.mubr.f32.mxu0 0.0
        %1875 = vmatmul.mubr.f32.gmra.mrb[0].mxu0 %v1751
        %v1876 = vpop.f32.mrb[0].mxu0
        %v1877 = vadd.f32 %v1730, %v1876
        %v1878 = vpop.f32.mrb[0].mxu0
        %1879 = vmatprep.mubr.f32.mxu0 0.0
        %1880 = vmatmul.mubr.f32.gmra.mrb[0].mxu0 %v1754
        %v1881 = vpop.f32.mrb[0].mxu0
        %v1882 = vadd.f32 %v1730, %v1881
        %v1883 = vpop.f32.mrb[0].mxu0
        %1884 = vmatprep.mubr.f32.mxu0 0.0
        %1885 = vmatmul.mubr.f32.gmra.mrb[0].mxu0 %v1757
        %v1886 = vpop.f32.mrb[0].mxu0
        %v1887 = vadd.f32 %v1730, %v1886
        %v1888 = vpop.f32.mrb[0].mxu0
        %1889 = vmatprep.mubr.f32.mxu0 0.0
        %1890 = vmatmul.mubr.f32.gmra.mrb[0].mxu0 %v1760
        %v1891 = vpop.f32.mrb[0].mxu0
        %v1892 = vadd.f32 %v1730, %v1891
        %v1893 = vpop.f32.mrb[0].mxu0
        %1894 = vmatprep.mubr.f32.mxu0 0.0
        %1895 = vmatmul.mubr.f32.gmra.mrb[0].mxu0 %v1763
        %v1896 = vpop.f32.mrb[0].mxu0
        %v1897 = vadd.f32 %v1730, %v1896
        %v1898 = vpop.f32.mrb[0].mxu0
        %1899 = vmatprep.mubr.f32.mxu0 0.0
        %1900 = vmatmul.mubr.f32.gmra.mrb[0].mxu0 %v1766
        %v1901 = vpop.f32.mrb[0].mxu0
        %v1902 = vadd.f32 %v1730, %v1901
        %v1903 = vpop.f32.mrb[0].mxu0
        %1904 = vmatprep.mubr.f32.mxu0 0.0
        %1905 = vmatmul.mubr.f32.gmra.mrb[0].mxu0 %v1769
        %v1906 = vpop.f32.mrb[0].mxu0
        %v1907 = vadd.f32 %v1730, %v1906
        %v1908 = vpop.f32.mrb[0].mxu0
        %1909 = vmatprep.mubr.f32.mxu0 0.0
        %1910 = vmatmul.mubr.f32.gmra.mrb[0].mxu0 %v1772
        %v1911 = vpop.f32.mrb[0].mxu0
        %v1912 = vadd.f32 %v1730, %v1911
        %v1913 = vpop.f32.mrb[0].mxu0
        %1914 = vmatprep.mubr.f32.mxu0 0.0
        %1915 = vmatmul.mubr.f32.gmra.mrb[0].mxu0 %v1775
        %v1916 = vpop.f32.mrb[0].mxu0
        %v1917 = vadd.f32 %v1730, %v1916
        %v1918 = vpop.f32.mrb[0].mxu0
        %1919 = vmatprep.mubr.f32.mxu0 0.0
        %1920 = vmatmul.mubr.f32.gmra.mrb[0].mxu0 %v1778
        %v1921 = vpop.f32.mrb[0].mxu0
        %v1922 = vadd.f32 %v1730, %v1921
        %v1923 = vpop.f32.mrb[0].mxu0
        %1924 = vdwg.mxu0
        %v1925 = vsel %vm939, %v1847, 0.0
        %1926 = vadd.xlane.f32.xlu0 %v1925
        %v1927 = vpop.xlane.xlu0 %1926
        %v1928 = vsel %vm939, %v1852, 0.0
        %1929 = vadd.xlane.f32.xlu0 %v1928
        %v1930 = vpop.xlane.xlu0 %1929
        %v1931 = vsel %vm939, %v1857, 0.0
        %1932 = vadd.xlane.f32.xlu0 %v1931
        %v1933 = vpop.xlane.xlu0 %1932
        %v1934 = vsel %vm939, %v1862, 0.0
        %1935 = vadd.xlane.f32.xlu0 %v1934
        %v1936 = vpop.xlane.xlu0 %1935
        %v1937 = vsel %vm939, %v1867, 0.0
        %1938 = vadd.xlane.f32.xlu0 %v1937
        %v1939 = vpop.xlane.xlu0 %1938
        %v1940 = vsel %vm939, %v1872, 0.0
        %1941 = vadd.xlane.f32.xlu0 %v1940
        %v1942 = vpop.xlane.xlu0 %1941
        %v1943 = vsel %vm939, %v1877, 0.0
        %1944 = vadd.xlane.f32.xlu0 %v1943
        %v1945 = vpop.xlane.xlu0 %1944
        %v1946 = vsel %vm939, %v1882, 0.0
        %1947 = vadd.xlane.f32.xlu0 %v1946
        %v1948 = vpop.xlane.xlu0 %1947
        %v1949 = vsel %vm939, %v1887, 0.0
        %1950 = vadd.xlane.f32.xlu0 %v1949
        %v1951 = vpop.xlane.xlu0 %1950
        %v1952 = vsel %vm939, %v1892, 0.0
        %1953 = vadd.xlane.f32.xlu0 %v1952
        %v1954 = vpop.xlane.xlu0 %1953
        %v1955 = vsel %vm939, %v1897, 0.0
        %1956 = vadd.xlane.f32.xlu0 %v1955
        %v1957 = vpop.xlane.xlu0 %1956
        %v1958 = vsel %vm939, %v1902, 0.0
        %1959 = vadd.xlane.f32.xlu0 %v1958
        %v1960 = vpop.xlane.xlu0 %1959
        %v1961 = vsel %vm939, %v1907, 0.0
        %1962 = vadd.xlane.f32.xlu0 %v1961
        %v1963 = vpop.xlane.xlu0 %1962
        %v1964 = vsel %vm939, %v1912, 0.0
        %1965 = vadd.xlane.f32.xlu0 %v1964
        %v1966 = vpop.xlane.xlu0 %1965
        %v1967 = vsel %vm939, %v1917, 0.0
        %1968 = vadd.xlane.f32.xlu0 %v1967
        %v1969 = vpop.xlane.xlu0 %1968
        %v1970 = vsel %vm939, %v1922, 0.0
        %1971 = vadd.xlane.f32.xlu0 %v1970
        %v1972 = vpop.xlane.xlu0 %1971
        %v1973 = vmul.f32 %v1927, %v1234
        %v1974 = vmul.f32 %v1930, %v1234
        %v1975 = vmul.f32 %v1933, %v1234
        %v1976 = vmul.f32 %v1936, %v1234
        %v1977 = vmul.f32 %v1939, %v1234
        %v1978 = vmul.f32 %v1942, %v1234
        %v1979 = vmul.f32 %v1945, %v1234
        %v1980 = vmul.f32 %v1948, %v1234
        %v1981 = vmul.f32 %v1951, %v1234
        %v1982 = vmul.f32 %v1954, %v1234
        %v1983 = vmul.f32 %v1957, %v1234
        %v1984 = vmul.f32 %v1960, %v1234
        %v1985 = vmul.f32 %v1963, %v1234
        %v1986 = vmul.f32 %v1966, %v1234
        %v1987 = vmul.f32 %v1969, %v1234
        %v1988 = vmul.f32 %v1972, %v1234
        %v1989 = vsub.f32 %v1847, %v1973
        %v1990 = vsub.f32 %v1852, %v1974
        %v1991 = vsub.f32 %v1857, %v1975
        %v1992 = vsub.f32 %v1862, %v1976
        %v1993 = vsub.f32 %v1867, %v1977
        %v1994 = vsub.f32 %v1872, %v1978
        %v1995 = vsub.f32 %v1877, %v1979
        %v1996 = vsub.f32 %v1882, %v1980
        %v1997 = vsub.f32 %v1887, %v1981
        %v1998 = vsub.f32 %v1892, %v1982
        %v1999 = vsub.f32 %v1897, %v1983
        %v2000 = vsub.f32 %v1902, %v1984
        %v2001 = vsub.f32 %v1907, %v1985
        %v2002 = vsub.f32 %v1912, %v1986
        %v2003 = vsub.f32 %v1917, %v1987
        %v2004 = vsub.f32 %v1922, %v1988
        %v2005 = vmul.f32 %v1989, %v1989
        %v2006 = vmul.f32 %v1990, %v1990
        %v2007 = vmul.f32 %v1991, %v1991
        %v2008 = vmul.f32 %v1992, %v1992
        %v2009 = vmul.f32 %v1993, %v1993
        %v2010 = vmul.f32 %v1994, %v1994
        %v2011 = vmul.f32 %v1995, %v1995
        %v2012 = vmul.f32 %v1996, %v1996
        %v2013 = vmul.f32 %v1997, %v1997
        %v2014 = vmul.f32 %v1998, %v1998
        %v2015 = vmul.f32 %v1999, %v1999
        %v2016 = vmul.f32 %v2000, %v2000
        %v2017 = vmul.f32 %v2001, %v2001
        %v2018 = vmul.f32 %v2002, %v2002
        %v2019 = vmul.f32 %v2003, %v2003
        %v2020 = vmul.f32 %v2004, %v2004
        %v2021 = vsel %vm939, %v2005, 0.0
        %2022 = vadd.xlane.f32.xlu0 %v2021
        %v2023 = vpop.xlane.xlu0 %2022
        %v2024 = vsel %vm939, %v2006, 0.0
        %2025 = vadd.xlane.f32.xlu0 %v2024
        %v2026 = vpop.xlane.xlu0 %2025
        %v2027 = vsel %vm939, %v2007, 0.0
        %2028 = vadd.xlane.f32.xlu0 %v2027
        %v2029 = vpop.xlane.xlu0 %2028
        %v2030 = vsel %vm939, %v2008, 0.0
        %2031 = vadd.xlane.f32.xlu0 %v2030
        %v2032 = vpop.xlane.xlu0 %2031
        %v2033 = vsel %vm939, %v2009, 0.0
        %2034 = vadd.xlane.f32.xlu0 %v2033
        %v2035 = vpop.xlane.xlu0 %2034
        %v2036 = vsel %vm939, %v2010, 0.0
        %2037 = vadd.xlane.f32.xlu0 %v2036
        %v2038 = vpop.xlane.xlu0 %2037
        %v2039 = vsel %vm939, %v2011, 0.0
        %2040 = vadd.xlane.f32.xlu0 %v2039
        %v2041 = vpop.xlane.xlu0 %2040
        %v2042 = vsel %vm939, %v2012, 0.0
        %2043 = vadd.xlane.f32.xlu0 %v2042
        %v2044 = vpop.xlane.xlu0 %2043
        %v2045 = vsel %vm939, %v2013, 0.0
        %2046 = vadd.xlane.f32.xlu0 %v2045
        %v2047 = vpop.xlane.xlu0 %2046
        %v2048 = vsel %vm939, %v2014, 0.0
        %2049 = vadd.xlane.f32.xlu0 %v2048
        %v2050 = vpop.xlane.xlu0 %2049
        %v2051 = vsel %vm939, %v2015, 0.0
        %2052 = vadd.xlane.f32.xlu0 %v2051
        %v2053 = vpop.xlane.xlu0 %2052
        %v2054 = vsel %vm939, %v2016, 0.0
        %2055 = vadd.xlane.f32.xlu0 %v2054
        %v2056 = vpop.xlane.xlu0 %2055
        %v2057 = vsel %vm939, %v2017, 0.0
        %2058 = vadd.xlane.f32.xlu0 %v2057
        %v2059 = vpop.xlane.xlu0 %2058
        %v2060 = vsel %vm939, %v2018, 0.0
        %2061 = vadd.xlane.f32.xlu0 %v2060
        %v2062 = vpop.xlane.xlu0 %2061
        %v2063 = vsel %vm939, %v2019, 0.0
        %2064 = vadd.xlane.f32.xlu0 %v2063
        %v2065 = vpop.xlane.xlu0 %2064
        %v2066 = vsel %vm939, %v2020, 0.0
        %2067 = vadd.xlane.f32.xlu0 %v2066
        %v2068 = vpop.xlane.xlu0 %2067
        %v2069 = vmul.f32 %v2023, %v1234
        %v2070 = vmul.f32 %v2026, %v1234
        %v2071 = vmul.f32 %v2029, %v1234
        %v2072 = vmul.f32 %v2032, %v1234
        %v2073 = vmul.f32 %v2035, %v1234
        %v2074 = vmul.f32 %v2038, %v1234
        %v2075 = vmul.f32 %v2041, %v1234
        %v2076 = vmul.f32 %v2044, %v1234
        %v2077 = vmul.f32 %v2047, %v1234
        %v2078 = vmul.f32 %v2050, %v1234
        %v2079 = vmul.f32 %v2053, %v1234
        %v2080 = vmul.f32 %v2056, %v1234
        %v2081 = vmul.f32 %v2059, %v1234
        %v2082 = vmul.f32 %v2062, %v1234
        %v2083 = vmul.f32 %v2065, %v1234
        %v2084 = vmul.f32 %v2068, %v1234
        %v2085 = vadd.f32 %v2069, 1e-05
        %v2086 = vadd.f32 %v2070, 1e-05
        %v2087 = vadd.f32 %v2071, 1e-05
        %v2088 = vadd.f32 %v2072, 1e-05
        %v2089 = vadd.f32 %v2073, 1e-05
        %v2090 = vadd.f32 %v2074, 1e-05
        %v2091 = vadd.f32 %v2075, 1e-05
        %v2092 = vadd.f32 %v2076, 1e-05
        %v2093 = vadd.f32 %v2077, 1e-05
        %v2094 = vadd.f32 %v2078, 1e-05
        %v2095 = vadd.f32 %v2079, 1e-05
        %v2096 = vadd.f32 %v2080, 1e-05
        %v2097 = vadd.f32 %v2081, 1e-05
        %v2098 = vadd.f32 %v2082, 1e-05
        %v2099 = vadd.f32 %v2083, 1e-05
        %v2100 = vadd.f32 %v2084, 1e-05
        %v2101 = vrsqrt.pop %v2085
        %v2102 = vrsqrt.pop %v2086
        %v2103 = vrsqrt.pop %v2087
        %v2104 = vrsqrt.pop %v2088
        %v2105 = vrsqrt.pop %v2089
        %v2106 = vrsqrt.pop %v2090
        %v2107 = vrsqrt.pop %v2091
        %v2108 = vrsqrt.pop %v2092
        %v2109 = vrsqrt.pop %v2093
        %v2110 = vrsqrt.pop %v2094
        %v2111 = vrsqrt.pop %v2095
        %v2112 = vrsqrt.pop %v2096
        %v2113 = vrsqrt.pop %v2097
        %v2114 = vrsqrt.pop %v2098
        %v2115 = vrsqrt.pop %v2099
        %v2116 = vrsqrt.pop %v2100
        %v2117 = vmul.f32 %v1989, %v2101
        %v2118 = vmul.f32 %v1990, %v2102
        %v2119 = vmul.f32 %v1991, %v2103
        %v2120 = vmul.f32 %v1992, %v2104
        %v2121 = vmul.f32 %v1993, %v2105
        %v2122 = vmul.f32 %v1994, %v2106
        %v2123 = vmul.f32 %v1995, %v2107
        %v2124 = vmul.f32 %v1996, %v2108
        %v2125 = vmul.f32 %v1997, %v2109
        %v2126 = vmul.f32 %v1998, %v2110
        %v2127 = vmul.f32 %v1999, %v2111
        %v2128 = vmul.f32 %v2000, %v2112
        %v2129 = vmul.f32 %v2001, %v2113
        %v2130 = vmul.f32 %v2002, %v2114
        %v2131 = vmul.f32 %v2003, %v2115
        %v2132 = vmul.f32 %v2004, %v2116
        %v2133 = vld [vmem:[%s7] sm:$0x1]
        %v2135 = vlaneseq
        %v2136 = vshrl.u32 %v2135, 7
        %v2137 = vsub.s32 0, %v2136
        %v2138 = vrot.slane %v2133, %v2137
        %v2140 = vmul.f32 %v2117, %v2138
        %v2141 = vmul.f32 %v2118, %v2138
        %v2142 = vmul.f32 %v2119, %v2138
        %v2143 = vmul.f32 %v2120, %v2138
        %v2144 = vmul.f32 %v2121, %v2138
        %v2145 = vmul.f32 %v2122, %v2138
        %v2146 = vmul.f32 %v2123, %v2138
        %v2147 = vmul.f32 %v2124, %v2138
        %v2148 = vmul.f32 %v2125, %v2138
        %v2149 = vmul.f32 %v2126, %v2138
        %v2150 = vmul.f32 %v2127, %v2138
        %v2151 = vmul.f32 %v2128, %v2138
        %v2152 = vmul.f32 %v2129, %v2138
        %v2153 = vmul.f32 %v2130, %v2138
        %v2154 = vmul.f32 %v2131, %v2138
        %v2155 = vmul.f32 %v2132, %v2138
        %v2156 = vld [vmem:[%s8] sm:$0x1]
        %v2158 = vlaneseq
        %v2159 = vshrl.u32 %v2158, 7
        %v2160 = vsub.s32 0, %v2159
        %v2161 = vrot.slane %v2156, %v2160
        %v2163 = vadd.f32 %v2140, %v2161
        %v2164 = vadd.f32 %v2141, %v2161
        %v2165 = vadd.f32 %v2142, %v2161
        %v2166 = vadd.f32 %v2143, %v2161
        %v2167 = vadd.f32 %v2144, %v2161
        %v2168 = vadd.f32 %v2145, %v2161
        %v2169 = vadd.f32 %v2146, %v2161
        %v2170 = vadd.f32 %v2147, %v2161
        %v2171 = vadd.f32 %v2148, %v2161
        %v2172 = vadd.f32 %v2149, %v2161
        %v2173 = vadd.f32 %v2150, %v2161
        %v2174 = vadd.f32 %v2151, %v2161
        %v2175 = vadd.f32 %v2152, %v2161
        %v2176 = vadd.f32 %v2153, %v2161
        %v2177 = vadd.f32 %v2154, %v2161
        %v2178 = vadd.f32 %v2155, %v2161
        %v2179 = vmax.f32 %v2163, 0.0
        %v2180 = vmax.f32 %v2164, 0.0
        %v2181 = vmax.f32 %v2165, 0.0
        %v2182 = vmax.f32 %v2166, 0.0
        %v2183 = vmax.f32 %v2167, 0.0
        %v2184 = vmax.f32 %v2168, 0.0
        %v2185 = vmax.f32 %v2169, 0.0
        %v2186 = vmax.f32 %v2170, 0.0
        %v2187 = vmax.f32 %v2171, 0.0
        %v2188 = vmax.f32 %v2172, 0.0
        %v2189 = vmax.f32 %v2173, 0.0
        %v2190 = vmax.f32 %v2174, 0.0
        %v2191 = vmax.f32 %v2175, 0.0
        %v2192 = vmax.f32 %v2176, 0.0
        %v2193 = vmax.f32 %v2177, 0.0
        %v2194 = vmax.f32 %v2178, 0.0
        %v2195 = vld [vmem:[%s9] sm:$0x1]
        %v2197 = vlaneseq
        %v2198 = vshrl.u32 %v2197, 7
        %v2199 = vsub.s32 0, %v2198
        %v2200 = vrot.slane %v2195, %v2199
        %v2202 = vmul.f32 %v2179, %v2200
        %v2203 = vmul.f32 %v2180, %v2200
        %v2204 = vmul.f32 %v2181, %v2200
        %v2205 = vmul.f32 %v2182, %v2200
        %v2206 = vmul.f32 %v2183, %v2200
        %v2207 = vmul.f32 %v2184, %v2200
        %v2208 = vmul.f32 %v2185, %v2200
        %v2209 = vmul.f32 %v2186, %v2200
        %v2210 = vmul.f32 %v2187, %v2200
        %v2211 = vmul.f32 %v2188, %v2200
        %v2212 = vmul.f32 %v2189, %v2200
        %v2213 = vmul.f32 %v2190, %v2200
        %v2214 = vmul.f32 %v2191, %v2200
        %v2215 = vmul.f32 %v2192, %v2200
        %v2216 = vmul.f32 %v2193, %v2200
        %v2217 = vmul.f32 %v2194, %v2200
        %v2218 = vsel %vm939, %v2202, 0.0
        %2219 = vadd.xlane.f32.xlu0 %v2218
        %v2220 = vpop.xlane.xlu0 %2219
        %v2221 = vsel %vm939, %v2203, 0.0
        %2222 = vadd.xlane.f32.xlu0 %v2221
        %v2223 = vpop.xlane.xlu0 %2222
        %v2224 = vsel %vm939, %v2204, 0.0
        %2225 = vadd.xlane.f32.xlu0 %v2224
        %v2226 = vpop.xlane.xlu0 %2225
        %v2227 = vsel %vm939, %v2205, 0.0
        %2228 = vadd.xlane.f32.xlu0 %v2227
        %v2229 = vpop.xlane.xlu0 %2228
        %v2230 = vsel %vm939, %v2206, 0.0
        %2231 = vadd.xlane.f32.xlu0 %v2230
        %v2232 = vpop.xlane.xlu0 %2231
        %v2233 = vsel %vm939, %v2207, 0.0
        %2234 = vadd.xlane.f32.xlu0 %v2233
        %v2235 = vpop.xlane.xlu0 %2234
        %v2236 = vsel %vm939, %v2208, 0.0
        %2237 = vadd.xlane.f32.xlu0 %v2236
        %v2238 = vpop.xlane.xlu0 %2237
        %v2239 = vsel %vm939, %v2209, 0.0
        %2240 = vadd.xlane.f32.xlu0 %v2239
        %v2241 = vpop.xlane.xlu0 %2240
        %v2242 = vsel %vm939, %v2210, 0.0
        %2243 = vadd.xlane.f32.xlu0 %v2242
        %v2244 = vpop.xlane.xlu0 %2243
        %v2245 = vsel %vm939, %v2211, 0.0
        %2246 = vadd.xlane.f32.xlu0 %v2245
        %v2247 = vpop.xlane.xlu0 %2246
        %v2248 = vsel %vm939, %v2212, 0.0
        %2249 = vadd.xlane.f32.xlu0 %v2248
        %v2250 = vpop.xlane.xlu0 %2249
        %v2251 = vsel %vm939, %v2213, 0.0
        %2252 = vadd.xlane.f32.xlu0 %v2251
        %v2253 = vpop.xlane.xlu0 %2252
        %v2254 = vsel %vm939, %v2214, 0.0
        %2255 = vadd.xlane.f32.xlu0 %v2254
        %v2256 = vpop.xlane.xlu0 %2255
        %v2257 = vsel %vm939, %v2215, 0.0
        %2258 = vadd.xlane.f32.xlu0 %v2257
        %v2259 = vpop.xlane.xlu0 %2258
        %v2260 = vsel %vm939, %v2216, 0.0
        %2261 = vadd.xlane.f32.xlu0 %v2260
        %v2262 = vpop.xlane.xlu0 %2261
        %v2263 = vsel %vm939, %v2217, 0.0
        %2264 = vadd.xlane.f32.xlu0 %v2263
        %v2265 = vpop.xlane.xlu0 %2264
        %v2266 = vld [vmem:[#allocation2] sm:$0x1]
        %s2267 = vtos %v2266
        %v2268 = vstv %s2267
        %v2269 = vadd.f32 %v2220, %v2268
        %v2270 = vadd.f32 %v2223, %v2268
        %v2271 = vadd.f32 %v2226, %v2268
        %v2272 = vadd.f32 %v2229, %v2268
        %v2273 = vadd.f32 %v2232, %v2268
        %v2274 = vadd.f32 %v2235, %v2268
        %v2275 = vadd.f32 %v2238, %v2268
        %v2276 = vadd.f32 %v2241, %v2268
        %v2277 = vadd.f32 %v2244, %v2268
        %v2278 = vadd.f32 %v2247, %v2268
        %v2279 = vadd.f32 %v2250, %v2268
        %v2280 = vadd.f32 %v2253, %v2268
        %v2281 = vadd.f32 %v2256, %v2268
        %v2282 = vadd.f32 %v2259, %v2268
        %v2283 = vadd.f32 %v2262, %v2268
        %v2284 = vadd.f32 %v2265, %v2268
        %v2285 = vmax.f32 %v2269, 0.0
        %v2286 = vmax.f32 %v2270, 0.0
        %v2287 = vmax.f32 %v2271, 0.0
        %v2288 = vmax.f32 %v2272, 0.0
        %v2289 = vmax.f32 %v2273, 0.0
        %v2290 = vmax.f32 %v2274, 0.0
        %v2291 = vmax.f32 %v2275, 0.0
        %v2292 = vmax.f32 %v2276, 0.0
        %v2293 = vmax.f32 %v2277, 0.0
        %v2294 = vmax.f32 %v2278, 0.0
        %v2295 = vmax.f32 %v2279, 0.0
        %v2296 = vmax.f32 %v2280, 0.0
        %v2297 = vmax.f32 %v2281, 0.0
        %v2298 = vmax.f32 %v2282, 0.0
        %v2299 = vmax.f32 %v2283, 0.0
        %v2300 = vmax.f32 %v2284, 0.0
        %v2317 = vlaneseq
        %v2318 = vand.u32 %v2317, 127
        %v2319 = vlaneseq
        %v2320 = vshrl.u32 %v2319, 7
        %v2321 = vsub.s32 %v2318, %v2320
        %v2322 = vrot.slane %v2285, %v2321
        %v2323 = vadd.s32 %v2318, 4294967288
        %v2324 = vlaneseq
        %v2325 = vshrl.u32 %v2324, 7
        %v2326 = vsub.s32 %v2323, %v2325
        %v2327 = vrot.slane %v2286, %v2326
        %vm2328 = vcmask 130112
        %v2329 = vsel %vm2328, %v2327, %v2322
        %v2330 = vlaneseq
        %v2331 = vshrl.u32 %v2330, 7
        %v2332 = vsub.s32 %v2318, %v2331
        %v2333 = vrot.slane %v2287, %v2332
        %v2334 = vlaneseq
        %v2335 = vshrl.u32 %v2334, 7
        %v2336 = vsub.s32 %v2323, %v2335
        %v2337 = vrot.slane %v2288, %v2336
        %v2338 = vsel %vm2328, %v2337, %v2333
        %v2339 = vlaneseq
        %v2340 = vshrl.u32 %v2339, 7
        %v2341 = vsub.s32 %v2318, %v2340
        %v2342 = vrot.slane %v2289, %v2341
        %v2343 = vlaneseq
        %v2344 = vshrl.u32 %v2343, 7
        %v2345 = vsub.s32 %v2323, %v2344
        %v2346 = vrot.slane %v2290, %v2345
        %v2347 = vsel %vm2328, %v2346, %v2342
        %v2348 = vlaneseq
        %v2349 = vshrl.u32 %v2348, 7
        %v2350 = vsub.s32 %v2318, %v2349
        %v2351 = vrot.slane %v2291, %v2350
        %v2352 = vlaneseq
        %v2353 = vshrl.u32 %v2352, 7
        %v2354 = vsub.s32 %v2323, %v2353
        %v2355 = vrot.slane %v2292, %v2354
        %v2356 = vsel %vm2328, %v2355, %v2351
        %v2357 = vlaneseq
        %v2358 = vshrl.u32 %v2357, 7
        %v2359 = vsub.s32 %v2318, %v2358
        %v2360 = vrot.slane %v2293, %v2359
        %v2361 = vlaneseq
        %v2362 = vshrl.u32 %v2361, 7
        %v2363 = vsub.s32 %v2323, %v2362
        %v2364 = vrot.slane %v2294, %v2363
        %v2365 = vsel %vm2328, %v2364, %v2360
        %v2366 = vlaneseq
        %v2367 = vshrl.u32 %v2366, 7
        %v2368 = vsub.s32 %v2318, %v2367
        %v2369 = vrot.slane %v2295, %v2368
        %v2370 = vlaneseq
        %v2371 = vshrl.u32 %v2370, 7
        %v2372 = vsub.s32 %v2323, %v2371
        %v2373 = vrot.slane %v2296, %v2372
        %v2374 = vsel %vm2328, %v2373, %v2369
        %v2375 = vlaneseq
        %v2376 = vshrl.u32 %v2375, 7
        %v2377 = vsub.s32 %v2318, %v2376
        %v2378 = vrot.slane %v2297, %v2377
        %v2379 = vlaneseq
        %v2380 = vshrl.u32 %v2379, 7
        %v2381 = vsub.s32 %v2323, %v2380
        %v2382 = vrot.slane %v2298, %v2381
        %v2383 = vsel %vm2328, %v2382, %v2378
        %v2384 = vlaneseq
        %v2385 = vshrl.u32 %v2384, 7
        %v2386 = vsub.s32 %v2318, %v2385
        %v2387 = vrot.slane %v2299, %v2386
        %v2388 = vlaneseq
        %v2389 = vshrl.u32 %v2388, 7
        %v2390 = vsub.s32 %v2323, %v2389
        %v2391 = vrot.slane %v2300, %v2390
        %v2392 = vsel %vm2328, %v2391, %v2387
        %vm2393 = vcmask 1041409
        %v2394 = vsel %vm2393, %v2338, %v2329
        %vm2395 = vcmask 1042434
        %v2396 = vsel %vm2395, %v2347, %v2394
        %vm2397 = vcmask 1043459
        %v2398 = vsel %vm2397, %v2356, %v2396
        %vm2399 = vcmask 1044484
        %v2400 = vsel %vm2399, %v2365, %v2398
        %vm2401 = vcmask 1045509
        %v2402 = vsel %vm2401, %v2374, %v2400
        %vm2403 = vcmask 1046534
        %v2404 = vsel %vm2403, %v2383, %v2402
        %vm2405 = vcmask 1047559
        %v2406 = vsel %vm2405, %v2392, %v2404
        %vm2408 = vcmask 130048
        %2409 = vst.msk [vmem:[%s384] sm:$0xff] %vm2408, %v2406
        %s2410 = sand.u32 %s271, 1
        %s2411 = scalar_lea.sflag [#allocation4], %s2410
        %s2412 = sand.u32 %s271, 1
        %s2413 = smul.addr %s2412, 8
        %s2414 = scalar_lea.vmem [#allocation3], %s2413
        // Predicated region
        $region65: #{tpu_custom_call.1} parent=63 // pred_check
          %p2415 = pneg %p281
        $region66: #{tpu_custom_call.1} parent=63 // pred_check_branch
          %2417 = sbr.rel (%p2415) target = $region68
        $region67: #{tpu_custom_call.1} parent=63 // pred_region
          %s2419 = ssub.s32 128, 128
          %2420 = vsyncadd %s2411, %s2419
          %s2421 = smul.addr %s27, 128
          %s2422 = scalar_lea.hbm %s11, %s2421
          %s2424 = sshll.u32 %s2414, 4
          %s2425 = int_to_ptr.vmem [resolvable:$true] %s2424
          %2427 = dma.vmem_to_hbm [thread:$0]  %s2425, 128, %s2422, %s2411
        $region68: #{tpu_custom_call.1} parent=63 // pred_fallthru
          _
      $region64: #{tpu_custom_call.1} parent=5 // pred_fallthru
        _
      %p2428 = scmp.le.s32.totalorder 2, %s22
      // Predicated region
      $region69: #{tpu_custom_call.1} parent=5 // pred_check
        %p2429 = pneg %p2428
      $region70: #{tpu_custom_call.1} parent=5 // pred_check_branch
        %2431 = sbr.rel (%p2429) target = $region72
      $region71: #{tpu_custom_call.1} parent=5 // pred_region
        %s2432 = ssub.s32 %s22, 2
        // Predicated region
        $region73: #{tpu_custom_call.1} parent=71 // pred_check
          %p2433 = pneg %p287
        $region74: #{tpu_custom_call.1} parent=71 // pred_check_branch
          %2435 = sbr.rel (%p2433) target = $region76
        $region75: #{tpu_custom_call.1} parent=71 // pred_region
          %s2436 = sand.u32 %s272, 1
          %s2437 = scalar_lea.sflag [#allocation4], %s2436
          %s2438 = sand.u32 %s272, 1
          %s2439 = smul.addr %s2438, 8
          %s2440 = scalar_lea.vmem [#allocation3], %s2439
          %2441 = dma.done %s2437, 128
        $region76: #{tpu_custom_call.1} parent=71 // pred_fallthru
          _
      $region72: #{tpu_custom_call.1} parent=5 // pred_fallthru
        _
    $region6: #{tpu_custom_call.1} parent=1 // loop_footer
      %s26 = sadd.s32 1, %s22
    $region7: #{tpu_custom_call.1} parent=1 // loop_footer_branch
      %21 = sbr.rel target = $region3
    $region8: #{tpu_custom_call.1} parent=1 // loop_exit
      _
    %2442 = vsyncpa [#allocation4], 1
    %s2443 = scalar_lea.sflag [#allocation4], 1
    %2444 = vsyncpa %s2443, 1

</llo_original>
